<compile_context>
chip_gen: v5e
topology: v5e:2x2
jax: 0.10.0
libtpu: 0.0.40
codegen_flags: <defaults>
</compile_context>

<pallas_src>
import math
import functools

import jax
import jax.numpy as jnp
from jax.experimental import pallas as pl
from jax.experimental.pallas import tpu as pltpu

EMBED_SIZE = 128          # the module always scales the embedding by sqrt(EMBED_SIZE)
_APPROX_SOFTMAX = True    # set False for strict parity tests against torch


# ---------------------------------------------------------------------------
# helpers
# ---------------------------------------------------------------------------
def _layer_norm(x, gamma, beta, eps=1e-5):
    # f32 statistics (parity with torch LayerNorm, eps=1e-5)
    mean = jnp.mean(x, axis=-1, keepdims=True)
    centered = x - mean
    var = jnp.mean(centered * centered, axis=-1, keepdims=True)
    return centered * jax.lax.rsqrt(var + eps) * gamma + beta


# ---------------------------------------------------------------------------
# fused kernel body: one (row_tile, layer) grid step
# ---------------------------------------------------------------------------
def _encoder_kernel(x_ref, pe_ref, wqkv_ref, bqkv_ref, wo_ref, bo_ref,
                    ln1g_ref, ln1b_ref, w1_ref, b1_ref, w2_ref, b2_ref,
                    ln2g_ref, ln2b_ref, fcw_ref, fcb_ref,
                    o_ref,
                    x2_ref, ctx_ref,
                    *, num_heads, seq_len):
    layer = pl.program_id(1)
    num_layers = pl.num_programs(1)
    Nt, E = x2_ref.shape
    S = seq_len
    Bt = Nt // S
    H = num_heads
    Dh = E // H
    bf16 = jnp.bfloat16

    # first layer of this row tile: fused positional-encoding add
    # (sqrt(EMBED_SIZE) is already folded into the embedding table)
    @pl.when(layer == 0)
    def _():
        x2_ref[...] = x_ref[...] + pe_ref[...]

    x2 = x2_ref[...]                                               # (Nt, E) f32

    # ---- self attention: combined in-proj (Q scale folded into Wq) ----------
    qkv = jnp.dot(x2.astype(bf16), wqkv_ref[...],
                  preferred_element_type=jnp.float32) + bqkv_ref[...]  # (Nt, 3E)
    q = qkv[:, :E].reshape(Bt, S, E)
    k = qkv[:, E:2 * E].reshape(Bt, S, E)
    v = qkv[:, 2 * E:].reshape(Bt, S, E)

    # per-head scores / softmax / context (single batch-dim einsums only);
    # context heads are written into a lane slice of a VMEM scratch so the
    # output projection is ONE K=E matmul instead of H accumulated K=Dh dots.
    for h in range(H):
        sl = slice(h * Dh, (h + 1) * Dh)
        qh = q[:, :, sl].astype(bf16)                              # (Bt, S, Dh)
        kh = k[:, :, sl].astype(bf16)
        vh = v[:, :, sl].astype(bf16)
        s = jnp.einsum('bqd,bkd->bqk', qh, kh,
                       preferred_element_type=jnp.float32)         # (Bt, S, S)
        s = s - jnp.max(s, axis=-1, keepdims=True)
        p = jnp.exp(s)
        denom = jnp.sum(p, axis=-1, keepdims=True)
        if _APPROX_SOFTMAX:
            p = p * pl.reciprocal(denom, approx=True)
        else:
            p = p / denom
        ctx_h = jnp.einsum('bqk,bkd->bqd', p.astype(bf16), vh,
                           preferred_element_type=jnp.float32)     # (Bt, S, Dh)
        ctx_ref[:, sl] = ctx_h.reshape(Nt, Dh)

    attn = jnp.dot(ctx_ref[...].astype(bf16), wo_ref[...],
                   preferred_element_type=jnp.float32) + bo_ref[...]

    # ---- residual + LayerNorm 1 (post-norm) ---------------------------------
    y = _layer_norm(x2 + attn, ln1g_ref[...], ln1b_ref[...])

    # ---- feed-forward: linear2(relu(linear1(y))) ----------------------------
    h1 = jnp.dot(y.astype(bf16), w1_ref[...],
                 preferred_element_type=jnp.float32) + b1_ref[...]
    h1 = jnp.maximum(h1, 0.0)
    ff = jnp.dot(h1.astype(bf16), w2_ref[...],
                 preferred_element_type=jnp.float32) + b2_ref[...]

    # ---- residual + LayerNorm 2 ---------------------------------------------
    y = _layer_norm(y + ff, ln2g_ref[...], ln2b_ref[...])
    x2_ref[...] = y

    # ---- final Linear (lane-dense padded vocab), last layer only ------------
    @pl.when(layer == num_layers - 1)
    def _():
        o_ref[...] = (jnp.dot(y.astype(bf16), fcw_ref[...],
                              preferred_element_type=jnp.float32)
                      + fcb_ref[...])


# ---------------------------------------------------------------------------
# wrapper
# ---------------------------------------------------------------------------
def transformer_forward(tokens, params, pe, num_heads, vocab_size):
    B, S = tokens.shape
    E = params["embed"].shape[1]
    N = B * S
    L = params["wqkv"].shape[0]
    F = params["w1"].shape[2]
    Vp = params["fc_w"].shape[1]

    # TODO(synk): embedding gather kept in plain-JAX glue (see header).
    x = jnp.take(params["embed"], tokens.reshape(-1), axis=0)         # (N, E) f32
    pe_rows = jnp.broadcast_to(pe[0, :S, :], (B, S, E)).reshape(N, E)

    # row tile = whole sequences (attention never crosses a tile); leading row
    # axis is "parallel" (v7x megacore), layer axis is "arbitrary" (sequential).
    batch_per_tile = max(1, min(B, 256 // S))
    while B % batch_per_tile:
        batch_per_tile -= 1
    row_tile = batch_per_tile * S
    num_row_tiles = N // row_tile

    def row_spec(width):
        return pl.BlockSpec((row_tile, width), lambda r, l: (r, 0))

    def per_layer(*dims):
        return pl.BlockSpec((None,) + dims, lambda r, l: (l, 0, 0))

    def shared(*dims):
        return pl.BlockSpec(dims, lambda r, l, n=len(dims): (0,) * n)

    out_padded = pl.pallas_call(
        functools.partial(_encoder_kernel, num_heads=num_heads, seq_len=S),
        out_shape=jax.ShapeDtypeStruct((N, Vp), jnp.float32),
        grid=(num_row_tiles, L),
        in_specs=[
            row_spec(E), row_spec(E),
            per_layer(E, 3 * E), per_layer(1, 3 * E),
            per_layer(E, E), per_layer(1, E),
            per_layer(1, E), per_layer(1, E),
            per_layer(E, F), per_layer(1, F),
            per_layer(F, E), per_layer(1, E),
            per_layer(1, E), per_layer(1, E),
            shared(E, Vp), shared(1, Vp),
        ],
        out_specs=pl.BlockSpec((row_tile, Vp), lambda r, l: (r, 0)),
        scratch_shapes=[pltpu.VMEM((row_tile, E), jnp.float32),   # running activation
                        pltpu.VMEM((row_tile, E), jnp.float32)],  # attention context
        compiler_params=pltpu.CompilerParams(
            dimension_semantics=("parallel", "arbitrary")),
    )(x, pe_rows, params["wqkv"], params["bqkv"], params["wo"], params["bo"],
      params["ln1_g"], params["ln1_b"], params["w1"], params["b1"],
      params["w2"], params["b2"], params["ln2_g"], params["ln2_b"],
      params["fc_w"], params["fc_b"])

    return out_padded.reshape(B, S, Vp)[..., :vocab_size]


# ---------------------------------------------------------------------------
# Parameter construction (scales folded in, matmul weights stored in bf16)
# ---------------------------------------------------------------------------
def make_pos_encoding(seq_len, d_model):
    pos = jnp.arange(seq_len, dtype=jnp.float32)[:, None]
    div = jnp.exp(jnp.arange(0, d_model, 2, dtype=jnp.float32)
                  * (-math.log(10000.0) / d_model))
    pe = jnp.zeros((seq_len, d_model), jnp.float32)
    pe = pe.at[:, 0::2].set(jnp.sin(pos * div))
    pe = pe.at[:, 1::2].set(jnp.cos(pos * div))
    return pe[None]  # (1, S, E)


def init_params(key, vocab_size, embed_size, num_heads, num_layers, ffn_dim):
    E, F, V, L, H = embed_size, ffn_dim, vocab_size, num_layers, num_heads
    Dh = E // H
    Vp = ((V + 127) // 128) * 128                     # lane-dense padded vocab
    keys = jax.random.split(key, 2 + 4 * L)
    ki = iter(keys)

    def rnd(k, shape):
        return 0.02 * jax.random.normal(k, shape, jnp.float32)

    # fold the module's sqrt(EMBED_SIZE) scale into the embedding table
    embed = rnd(next(ki), (V, E)) * math.sqrt(EMBED_SIZE)

    # final FC padded to a multiple of 128 output lanes (extra logits are zero)
    fc_w = jnp.zeros((E, Vp), jnp.float32).at[:, :V].set(rnd(next(ki), (E, V)))
    fc_b = jnp.zeros((1, Vp), jnp.float32)

    wqkv, wo, w1, w2 = [], [], [], []
    for _ in range(L):
        w = rnd(next(ki), (E, 3 * E))
        # fold the 1/sqrt(Dh) attention scale into the Q third of the in-proj
        # (valid only while the matching Q bias is zero, as it is here)
        w = w.at[:, :E].multiply(1.0 / math.sqrt(Dh))
        wqkv.append(w)
        wo.append(rnd(next(ki), (E, E)))
        w1.append(rnd(next(ki), (E, F)))
        w2.append(rnd(next(ki), (F, E)))

    def stack_bf16(lst):
        return jnp.stack(lst).astype(jnp.bfloat16)

    return {
        "embed": embed,
        "fc_w": fc_w.astype(jnp.bfloat16),
        "fc_b": fc_b,
        "wqkv": stack_bf16(wqkv),
        "bqkv": jnp.zeros((L, 1, 3 * E), jnp.float32),
        "wo":   stack_bf16(wo),
        "bo":   jnp.zeros((L, 1, E), jnp.float32),
        "ln1_g": jnp.ones((L, 1, E), jnp.float32),
        "ln1_b": jnp.zeros((L, 1, E), jnp.float32),
        "w1":   stack_bf16(w1),
        "b1":   jnp.zeros((L, 1, F), jnp.float32),
        "w2":   stack_bf16(w2),
        "b2":   jnp.zeros((L, 1, E), jnp.float32),
        "ln2_g": jnp.ones((L, 1, E), jnp.float32),
        "ln2_b": jnp.zeros((L, 1, E), jnp.float32),
    }


if __name__ == "__main__":
    VOCAB = 64
    E = 128          # matches EMBED_SIZE used in the module's scaling
    HEADS = 4
    LAYERS = 2
    FFN = 256
    B, S = 2, 8

    key = jax.random.PRNGKey(0)
    k_tok, k_par = jax.random.split(key)
    tokens = jax.random.randint(k_tok, (B, S), 0, VOCAB, dtype=jnp.int32)
    params = init_params(k_par, VOCAB, E, HEADS, LAYERS, FFN)
    pe = make_pos_encoding(S, E)

    logits = transformer_forward(tokens, params, pe, HEADS, VOCAB)
    logits = jax.block_until_ready(logits)
    assert logits.shape == (B, S, VOCAB)
    assert jnp.all(jnp.isfinite(logits))
    print("KERNEL_OK")
</pallas_src>

<mosaic_0001>
module attributes {stable_mosaic.version = 11 : i64} {
  func.func @_encoder_kernel(%arg0: i32, %arg1: i32, %arg2: memref<16x128xf32, #tpu.memory_space<vmem>>, %arg3: memref<16x128xf32, #tpu.memory_space<vmem>>, %arg4: memref<1x128x384xbf16, #tpu.memory_space<vmem>>, %arg5: memref<1x1x384xf32, #tpu.memory_space<vmem>>, %arg6: memref<1x128x128xbf16, #tpu.memory_space<vmem>>, %arg7: memref<1x1x128xf32, #tpu.memory_space<vmem>>, %arg8: memref<1x1x128xf32, #tpu.memory_space<vmem>>, %arg9: memref<1x1x128xf32, #tpu.memory_space<vmem>>, %arg10: memref<1x128x256xbf16, #tpu.memory_space<vmem>>, %arg11: memref<1x1x256xf32, #tpu.memory_space<vmem>>, %arg12: memref<1x256x128xbf16, #tpu.memory_space<vmem>>, %arg13: memref<1x1x128xf32, #tpu.memory_space<vmem>>, %arg14: memref<1x1x128xf32, #tpu.memory_space<vmem>>, %arg15: memref<1x1x128xf32, #tpu.memory_space<vmem>>, %arg16: memref<128x128xbf16, #tpu.memory_space<vmem>>, %arg17: memref<1x128xf32, #tpu.memory_space<vmem>>, %arg18: memref<16x128xf32, #tpu.memory_space<vmem>>, %arg19: memref<16x128xf32, #tpu.memory_space<vmem>>, %arg20: memref<16x128xf32, #tpu.memory_space<vmem>>) attributes {dimension_semantics = [#tpu.dimension_semantics<parallel>, #tpu.dimension_semantics<arbitrary>], iteration_bounds = array<i64: 1, 2>, scalar_prefetch = 0 : i64, scratch_operands = 2 : i64, tpu.core_type = #tpu.core_type<tc>, window_params = [{transform_indices = @transform_0, window_bounds = array<i64: 16, 128>}, {transform_indices = @transform_1, window_bounds = array<i64: 16, 128>}, {transform_indices = @transform_2, window_bounds = array<i64: 1, 128, 384>}, {transform_indices = @transform_3, window_bounds = array<i64: 1, 1, 384>}, {transform_indices = @transform_4, window_bounds = array<i64: 1, 128, 128>}, {transform_indices = @transform_5, window_bounds = array<i64: 1, 1, 128>}, {transform_indices = @transform_6, window_bounds = array<i64: 1, 1, 128>}, {transform_indices = @transform_7, window_bounds = array<i64: 1, 1, 128>}, {transform_indices = @transform_8, window_bounds = array<i64: 1, 128, 256>}, {transform_indices = @transform_9, window_bounds = array<i64: 1, 1, 256>}, {transform_indices = @transform_10, window_bounds = array<i64: 1, 256, 128>}, {transform_indices = @transform_11, window_bounds = array<i64: 1, 1, 128>}, {transform_indices = @transform_12, window_bounds = array<i64: 1, 1, 128>}, {transform_indices = @transform_13, window_bounds = array<i64: 1, 1, 128>}, {pipeline_mode = #tpu.pipeline_mode<synchronous>, transform_indices = @transform_14, window_bounds = array<i64: 128, 128>}, {pipeline_mode = #tpu.pipeline_mode<synchronous>, transform_indices = @transform_15, window_bounds = array<i64: 1, 128>}, {transform_indices = @transform_16, window_bounds = array<i64: 16, 128>}]} {
    %c0_i32 = arith.constant 0 : i32
    %0 = arith.cmpi eq, %arg1, %c0_i32 : i32
    %1 = arith.extui %0 : i1 to i32
    %c0_i32_0 = arith.constant 0 : i32
    %2 = arith.cmpi ne, %1, %c0_i32_0 : i32
    scf.if %2 {
      %c0_78 = arith.constant 0 : index
      %c0_79 = arith.constant 0 : index
      %183 = vector.load %arg2[%c0_78, %c0_79] : memref<16x128xf32, #tpu.memory_space<vmem>>, vector<16x128xf32>
      %c0_80 = arith.constant 0 : index
      %c0_81 = arith.constant 0 : index
      %184 = vector.load %arg3[%c0_80, %c0_81] : memref<16x128xf32, #tpu.memory_space<vmem>>, vector<16x128xf32>
      %185 = arith.addf %183, %184 : vector<16x128xf32>
      %c0_82 = arith.constant 0 : index
      %c0_83 = arith.constant 0 : index
      %186 = vector.load %arg19[%c0_82, %c0_83] : memref<16x128xf32, #tpu.memory_space<vmem>>, vector<16x128xf32>
      tpu.vector_store %arg19[%c0_82, %c0_83], %185 {strides = array<i32>} : memref<16x128xf32, #tpu.memory_space<vmem>>, vector<16x128xf32>,
    } else {
    }
    %c0 = arith.constant 0 : index
    %c0_1 = arith.constant 0 : index
    %3 = vector.load %arg19[%c0, %c0_1] : memref<16x128xf32, #tpu.memory_space<vmem>>, vector<16x128xf32>
    %4 = arith.truncf %3 : vector<16x128xf32> to vector<16x128xbf16>
    %c0_2 = arith.constant 0 : index
    %c0_3 = arith.constant 0 : index
    %c0_4 = arith.constant 0 : index
    %5 = vector.load %arg4[%c0_2, %c0_3, %c0_4] : memref<1x128x384xbf16, #tpu.memory_space<vmem>>, vector<1x128x384xbf16>
    %6 = vector.shape_cast %5 : vector<1x128x384xbf16> to vector<128x384xbf16>
    %cst = arith.constant dense<0.000000e+00> : vector<16x384xf32>
    %7 = tpu.matmul %4, %6, %cst {dimension_numbers = #tpu.dot_dimension_numbers<[1], [0], [0], [1], [0, 0, 1, 1], [], []>} : vector<16x128xbf16>, vector<128x384xbf16>, vector<16x384xf32> -> vector<16x384xf32>
    %c0_5 = arith.constant 0 : index
    %c0_6 = arith.constant 0 : index
    %c0_7 = arith.constant 0 : index
    %8 = vector.load %arg5[%c0_5, %c0_6, %c0_7] : memref<1x1x384xf32, #tpu.memory_space<vmem>>, vector<1x1x384xf32>
    %9 = vector.shape_cast %8 : vector<1x1x384xf32> to vector<1x384xf32>
    %10 = vector.broadcast %9 : vector<1x384xf32> to vector<16x384xf32>
    %11 = arith.addf %7, %10 : vector<16x384xf32>
    %12 = vector.extract_strided_slice %11 {offsets = [0, 0], sizes = [16, 128], strides = [1, 1]} : vector<16x384xf32> to vector<16x128xf32>
    %13 = vector.shape_cast %12 : vector<16x128xf32> to vector<2x8x128xf32>
    %14 = vector.extract_strided_slice %11 {offsets = [0, 128], sizes = [16, 128], strides = [1, 1]} : vector<16x384xf32> to vector<16x128xf32>
    %15 = vector.shape_cast %14 : vector<16x128xf32> to vector<2x8x128xf32>
    %16 = vector.extract_strided_slice %11 {offsets = [0, 256], sizes = [16, 128], strides = [1, 1]} : vector<16x384xf32> to vector<16x128xf32>
    %17 = vector.shape_cast %16 : vector<16x128xf32> to vector<2x8x128xf32>
    %18 = vector.extract_strided_slice %13 {offsets = [0, 0, 0], sizes = [2, 8, 32], strides = [1, 1, 1]} : vector<2x8x128xf32> to vector<2x8x32xf32>
    %19 = arith.truncf %18 : vector<2x8x32xf32> to vector<2x8x32xbf16>
    %20 = vector.extract_strided_slice %15 {offsets = [0, 0, 0], sizes = [2, 8, 32], strides = [1, 1, 1]} : vector<2x8x128xf32> to vector<2x8x32xf32>
    %21 = arith.truncf %20 : vector<2x8x32xf32> to vector<2x8x32xbf16>
    %22 = vector.extract_strided_slice %17 {offsets = [0, 0, 0], sizes = [2, 8, 32], strides = [1, 1, 1]} : vector<2x8x128xf32> to vector<2x8x32xf32>
    %23 = arith.truncf %22 : vector<2x8x32xf32> to vector<2x8x32xbf16>
    "tpu.trace_start"() <{level = 10 : i32, message = "bqd,bkd->bqk"}> : () -> ()
    %cst_8 = arith.constant dense<0.000000e+00> : vector<2x8x8xf32>
    %24 = tpu.matmul %19, %21, %cst_8 {dimension_numbers = #tpu.dot_dimension_numbers<[2], [2], [1], [1], [0, 0, 0, 1, 1, 1], [0], [0]>} : vector<2x8x32xbf16>, vector<2x8x32xbf16>, vector<2x8x8xf32> -> vector<2x8x8xf32>
    "tpu.trace_stop"() : () -> ()
    %cst_9 = arith.constant dense<0xFF800000> : vector<2x8xf32>
    %25 = vector.multi_reduction <maximumf>, %24, %cst_9 [2] : vector<2x8x8xf32> to vector<2x8xf32>
    %26 = vector.shape_cast %25 : vector<2x8xf32> to vector<2x8x1xf32>
    %27 = vector.broadcast %26 : vector<2x8x1xf32> to vector<2x8x8xf32>
    %28 = arith.subf %24, %27 : vector<2x8x8xf32>
    %29 = math.exp %28 : vector<2x8x8xf32>
    %cst_10 = arith.constant dense<0.000000e+00> : vector<2x8xf32>
    %30 = vector.multi_reduction <add>, %29, %cst_10 [2] : vector<2x8x8xf32> to vector<2x8xf32>
    %31 = vector.shape_cast %30 : vector<2x8xf32> to vector<2x8x1xf32>
    %32 = tpu.reciprocal %31 {approx = true} : vector<2x8x1xf32> -> vector<2x8x1xf32>
    %33 = vector.broadcast %32 : vector<2x8x1xf32> to vector<2x8x8xf32>
    %34 = arith.mulf %29, %33 : vector<2x8x8xf32>
    %35 = arith.truncf %34 : vector<2x8x8xf32> to vector<2x8x8xbf16>
    "tpu.trace_start"() <{level = 10 : i32, message = "bqk,bkd->bqd"}> : () -> ()
    %cst_11 = arith.constant dense<0.000000e+00> : vector<2x8x32xf32>
    %36 = tpu.matmul %35, %23, %cst_11 {dimension_numbers = #tpu.dot_dimension_numbers<[2], [1], [1], [2], [0, 0, 0, 1, 1, 2], [0], [0]>} : vector<2x8x8xbf16>, vector<2x8x32xbf16>, vector<2x8x32xf32> -> vector<2x8x32xf32>
    "tpu.trace_stop"() : () -> ()
    %37 = vector.shape_cast %36 : vector<2x8x32xf32> to vector<16x32xf32>
    %c0_12 = arith.constant 0 : index
    %c0_13 = arith.constant 0 : index
    %38 = vector.load %arg20[%c0_12, %c0_13] : memref<16x128xf32, #tpu.memory_space<vmem>>, vector<16x32xf32>
    tpu.vector_store %arg20[%c0_12, %c0_13], %37 {strides = array<i32>} : memref<16x128xf32, #tpu.memory_space<vmem>>, vector<16x32xf32>,
    %39 = vector.extract_strided_slice %13 {offsets = [0, 0, 32], sizes = [2, 8, 32], strides = [1, 1, 1]} : vector<2x8x128xf32> to vector<2x8x32xf32>
    %40 = arith.truncf %39 : vector<2x8x32xf32> to vector<2x8x32xbf16>
    %41 = vector.extract_strided_slice %15 {offsets = [0, 0, 32], sizes = [2, 8, 32], strides = [1, 1, 1]} : vector<2x8x128xf32> to vector<2x8x32xf32>
    %42 = arith.truncf %41 : vector<2x8x32xf32> to vector<2x8x32xbf16>
    %43 = vector.extract_strided_slice %17 {offsets = [0, 0, 32], sizes = [2, 8, 32], strides = [1, 1, 1]} : vector<2x8x128xf32> to vector<2x8x32xf32>
    %44 = arith.truncf %43 : vector<2x8x32xf32> to vector<2x8x32xbf16>
    "tpu.trace_start"() <{level = 10 : i32, message = "bqd,bkd->bqk"}> : () -> ()
    %cst_14 = arith.constant dense<0.000000e+00> : vector<2x8x8xf32>
    %45 = tpu.matmul %40, %42, %cst_14 {dimension_numbers = #tpu.dot_dimension_numbers<[2], [2], [1], [1], [0, 0, 0, 1, 1, 1], [0], [0]>} : vector<2x8x32xbf16>, vector<2x8x32xbf16>, vector<2x8x8xf32> -> vector<2x8x8xf32>
    "tpu.trace_stop"() : () -> ()
    %cst_15 = arith.constant dense<0xFF800000> : vector<2x8xf32>
    %46 = vector.multi_reduction <maximumf>, %45, %cst_15 [2] : vector<2x8x8xf32> to vector<2x8xf32>
    %47 = vector.shape_cast %46 : vector<2x8xf32> to vector<2x8x1xf32>
    %48 = vector.broadcast %47 : vector<2x8x1xf32> to vector<2x8x8xf32>
    %49 = arith.subf %45, %48 : vector<2x8x8xf32>
    %50 = math.exp %49 : vector<2x8x8xf32>
    %cst_16 = arith.constant dense<0.000000e+00> : vector<2x8xf32>
    %51 = vector.multi_reduction <add>, %50, %cst_16 [2] : vector<2x8x8xf32> to vector<2x8xf32>
    %52 = vector.shape_cast %51 : vector<2x8xf32> to vector<2x8x1xf32>
    %53 = tpu.reciprocal %52 {approx = true} : vector<2x8x1xf32> -> vector<2x8x1xf32>
    %54 = vector.broadcast %53 : vector<2x8x1xf32> to vector<2x8x8xf32>
    %55 = arith.mulf %50, %54 : vector<2x8x8xf32>
    %56 = arith.truncf %55 : vector<2x8x8xf32> to vector<2x8x8xbf16>
    "tpu.trace_start"() <{level = 10 : i32, message = "bqk,bkd->bqd"}> : () -> ()
    %cst_17 = arith.constant dense<0.000000e+00> : vector<2x8x32xf32>
    %57 = tpu.matmul %56, %44, %cst_17 {dimension_numbers = #tpu.dot_dimension_numbers<[2], [1], [1], [2], [0, 0, 0, 1, 1, 2], [0], [0]>} : vector<2x8x8xbf16>, vector<2x8x32xbf16>, vector<2x8x32xf32> -> vector<2x8x32xf32>
    "tpu.trace_stop"() : () -> ()
    %58 = vector.shape_cast %57 : vector<2x8x32xf32> to vector<16x32xf32>
    %c0_18 = arith.constant 0 : index
    %c32 = arith.constant 32 : index
    %59 = vector.load %arg20[%c0_18, %c32] : memref<16x128xf32, #tpu.memory_space<vmem>>, vector<16x32xf32>
    tpu.vector_store %arg20[%c0_18, %c32], %58 {strides = array<i32>} : memref<16x128xf32, #tpu.memory_space<vmem>>, vector<16x32xf32>,
    %60 = vector.extract_strided_slice %13 {offsets = [0, 0, 64], sizes = [2, 8, 32], strides = [1, 1, 1]} : vector<2x8x128xf32> to vector<2x8x32xf32>
    %61 = arith.truncf %60 : vector<2x8x32xf32> to vector<2x8x32xbf16>
    %62 = vector.extract_strided_slice %15 {offsets = [0, 0, 64], sizes = [2, 8, 32], strides = [1, 1, 1]} : vector<2x8x128xf32> to vector<2x8x32xf32>
    %63 = arith.truncf %62 : vector<2x8x32xf32> to vector<2x8x32xbf16>
    %64 = vector.extract_strided_slice %17 {offsets = [0, 0, 64], sizes = [2, 8, 32], strides = [1, 1, 1]} : vector<2x8x128xf32> to vector<2x8x32xf32>
    %65 = arith.truncf %64 : vector<2x8x32xf32> to vector<2x8x32xbf16>
    "tpu.trace_start"() <{level = 10 : i32, message = "bqd,bkd->bqk"}> : () -> ()
    %cst_19 = arith.constant dense<0.000000e+00> : vector<2x8x8xf32>
    %66 = tpu.matmul %61, %63, %cst_19 {dimension_numbers = #tpu.dot_dimension_numbers<[2], [2], [1], [1], [0, 0, 0, 1, 1, 1], [0], [0]>} : vector<2x8x32xbf16>, vector<2x8x32xbf16>, vector<2x8x8xf32> -> vector<2x8x8xf32>
    "tpu.trace_stop"() : () -> ()
    %cst_20 = arith.constant dense<0xFF800000> : vector<2x8xf32>
    %67 = vector.multi_reduction <maximumf>, %66, %cst_20 [2] : vector<2x8x8xf32> to vector<2x8xf32>
    %68 = vector.shape_cast %67 : vector<2x8xf32> to vector<2x8x1xf32>
    %69 = vector.broadcast %68 : vector<2x8x1xf32> to vector<2x8x8xf32>
    %70 = arith.subf %66, %69 : vector<2x8x8xf32>
    %71 = math.exp %70 : vector<2x8x8xf32>
    %cst_21 = arith.constant dense<0.000000e+00> : vector<2x8xf32>
    %72 = vector.multi_reduction <add>, %71, %cst_21 [2] : vector<2x8x8xf32> to vector<2x8xf32>
    %73 = vector.shape_cast %72 : vector<2x8xf32> to vector<2x8x1xf32>
    %74 = tpu.reciprocal %73 {approx = true} : vector<2x8x1xf32> -> vector<2x8x1xf32>
    %75 = vector.broadcast %74 : vector<2x8x1xf32> to vector<2x8x8xf32>
    %76 = arith.mulf %71, %75 : vector<2x8x8xf32>
    %77 = arith.truncf %76 : vector<2x8x8xf32> to vector<2x8x8xbf16>
    "tpu.trace_start"() <{level = 10 : i32, message = "bqk,bkd->bqd"}> : () -> ()
    %cst_22 = arith.constant dense<0.000000e+00> : vector<2x8x32xf32>
    %78 = tpu.matmul %77, %65, %cst_22 {dimension_numbers = #tpu.dot_dimension_numbers<[2], [1], [1], [2], [0, 0, 0, 1, 1, 2], [0], [0]>} : vector<2x8x8xbf16>, vector<2x8x32xbf16>, vector<2x8x32xf32> -> vector<2x8x32xf32>
    "tpu.trace_stop"() : () -> ()
    %79 = vector.shape_cast %78 : vector<2x8x32xf32> to vector<16x32xf32>
    %c0_23 = arith.constant 0 : index
    %c64 = arith.constant 64 : index
    %80 = vector.load %arg20[%c0_23, %c64] : memref<16x128xf32, #tpu.memory_space<vmem>>, vector<16x32xf32>
    tpu.vector_store %arg20[%c0_23, %c64], %79 {strides = array<i32>} : memref<16x128xf32, #tpu.memory_space<vmem>>, vector<16x32xf32>,
    %81 = vector.extract_strided_slice %13 {offsets = [0, 0, 96], sizes = [2, 8, 32], strides = [1, 1, 1]} : vector<2x8x128xf32> to vector<2x8x32xf32>
    %82 = arith.truncf %81 : vector<2x8x32xf32> to vector<2x8x32xbf16>
    %83 = vector.extract_strided_slice %15 {offsets = [0, 0, 96], sizes = [2, 8, 32], strides = [1, 1, 1]} : vector<2x8x128xf32> to vector<2x8x32xf32>
    %84 = arith.truncf %83 : vector<2x8x32xf32> to vector<2x8x32xbf16>
    %85 = vector.extract_strided_slice %17 {offsets = [0, 0, 96], sizes = [2, 8, 32], strides = [1, 1, 1]} : vector<2x8x128xf32> to vector<2x8x32xf32>
    %86 = arith.truncf %85 : vector<2x8x32xf32> to vector<2x8x32xbf16>
    "tpu.trace_start"() <{level = 10 : i32, message = "bqd,bkd->bqk"}> : () -> ()
    %cst_24 = arith.constant dense<0.000000e+00> : vector<2x8x8xf32>
    %87 = tpu.matmul %82, %84, %cst_24 {dimension_numbers = #tpu.dot_dimension_numbers<[2], [2], [1], [1], [0, 0, 0, 1, 1, 1], [0], [0]>} : vector<2x8x32xbf16>, vector<2x8x32xbf16>, vector<2x8x8xf32> -> vector<2x8x8xf32>
    "tpu.trace_stop"() : () -> ()
    %cst_25 = arith.constant dense<0xFF800000> : vector<2x8xf32>
    %88 = vector.multi_reduction <maximumf>, %87, %cst_25 [2] : vector<2x8x8xf32> to vector<2x8xf32>
    %89 = vector.shape_cast %88 : vector<2x8xf32> to vector<2x8x1xf32>
    %90 = vector.broadcast %89 : vector<2x8x1xf32> to vector<2x8x8xf32>
    %91 = arith.subf %87, %90 : vector<2x8x8xf32>
    %92 = math.exp %91 : vector<2x8x8xf32>
    %cst_26 = arith.constant dense<0.000000e+00> : vector<2x8xf32>
    %93 = vector.multi_reduction <add>, %92, %cst_26 [2] : vector<2x8x8xf32> to vector<2x8xf32>
    %94 = vector.shape_cast %93 : vector<2x8xf32> to vector<2x8x1xf32>
    %95 = tpu.reciprocal %94 {approx = true} : vector<2x8x1xf32> -> vector<2x8x1xf32>
    %96 = vector.broadcast %95 : vector<2x8x1xf32> to vector<2x8x8xf32>
    %97 = arith.mulf %92, %96 : vector<2x8x8xf32>
    %98 = arith.truncf %97 : vector<2x8x8xf32> to vector<2x8x8xbf16>
    "tpu.trace_start"() <{level = 10 : i32, message = "bqk,bkd->bqd"}> : () -> ()
    %cst_27 = arith.constant dense<0.000000e+00> : vector<2x8x32xf32>
    %99 = tpu.matmul %98, %86, %cst_27 {dimension_numbers = #tpu.dot_dimension_numbers<[2], [1], [1], [2], [0, 0, 0, 1, 1, 2], [0], [0]>} : vector<2x8x8xbf16>, vector<2x8x32xbf16>, vector<2x8x32xf32> -> vector<2x8x32xf32>
    "tpu.trace_stop"() : () -> ()
    %100 = vector.shape_cast %99 : vector<2x8x32xf32> to vector<16x32xf32>
    %c0_28 = arith.constant 0 : index
    %c96 = arith.constant 96 : index
    %101 = vector.load %arg20[%c0_28, %c96] : memref<16x128xf32, #tpu.memory_space<vmem>>, vector<16x32xf32>
    tpu.vector_store %arg20[%c0_28, %c96], %100 {strides = array<i32>} : memref<16x128xf32, #tpu.memory_space<vmem>>, vector<16x32xf32>,
    %c0_29 = arith.constant 0 : index
    %c0_30 = arith.constant 0 : index
    %102 = vector.load %arg20[%c0_29, %c0_30] : memref<16x128xf32, #tpu.memory_space<vmem>>, vector<16x128xf32>
    %103 = arith.truncf %102 : vector<16x128xf32> to vector<16x128xbf16>
    %c0_31 = arith.constant 0 : index
    %c0_32 = arith.constant 0 : index
    %c0_33 = arith.constant 0 : index
    %104 = vector.load %arg6[%c0_31, %c0_32, %c0_33] : memref<1x128x128xbf16, #tpu.memory_space<vmem>>, vector<1x128x128xbf16>
    %105 = vector.shape_cast %104 : vector<1x128x128xbf16> to vector<128x128xbf16>
    %cst_34 = arith.constant dense<0.000000e+00> : vector<16x128xf32>
    %106 = tpu.matmul %103, %105, %cst_34 {dimension_numbers = #tpu.dot_dimension_numbers<[1], [0], [0], [1], [0, 0, 1, 1], [], []>} : vector<16x128xbf16>, vector<128x128xbf16>, vector<16x128xf32> -> vector<16x128xf32>
    %c0_35 = arith.constant 0 : index
    %c0_36 = arith.constant 0 : index
    %c0_37 = arith.constant 0 : index
    %107 = vector.load %arg7[%c0_35, %c0_36, %c0_37] : memref<1x1x128xf32, #tpu.memory_space<vmem>>, vector<1x1x128xf32>
    %108 = vector.shape_cast %107 : vector<1x1x128xf32> to vector<1x128xf32>
    %109 = vector.broadcast %108 : vector<1x128xf32> to vector<16x128xf32>
    %110 = arith.addf %106, %109 : vector<16x128xf32>
    %111 = arith.addf %3, %110 : vector<16x128xf32>
    %c0_38 = arith.constant 0 : index
    %c0_39 = arith.constant 0 : index
    %c0_40 = arith.constant 0 : index
    %112 = vector.load %arg8[%c0_38, %c0_39, %c0_40] : memref<1x1x128xf32, #tpu.memory_space<vmem>>, vector<1x1x128xf32>
    %113 = vector.shape_cast %112 : vector<1x1x128xf32> to vector<1x128xf32>
    %c0_41 = arith.constant 0 : index
    %c0_42 = arith.constant 0 : index
    %c0_43 = arith.constant 0 : index
    %114 = vector.load %arg9[%c0_41, %c0_42, %c0_43] : memref<1x1x128xf32, #tpu.memory_space<vmem>>, vector<1x1x128xf32>
    %115 = vector.shape_cast %114 : vector<1x1x128xf32> to vector<1x128xf32>
    %cst_44 = arith.constant dense<0.000000e+00> : vector<16xf32>
    %116 = vector.multi_reduction <add>, %111, %cst_44 [1] : vector<16x128xf32> to vector<16xf32>
    %117 = vector.shape_cast %116 : vector<16xf32> to vector<16x1xf32>
    %cst_45 = arith.constant 1.280000e+02 : f32
    %118 = vector.broadcast %cst_45 : f32 to vector<16x1xf32>
    %119 = arith.divf %117, %118 : vector<16x1xf32>
    %120 = vector.broadcast %119 : vector<16x1xf32> to vector<16x128xf32>
    %121 = arith.subf %111, %120 : vector<16x128xf32>
    %122 = arith.mulf %121, %121 : vector<16x128xf32>
    %cst_46 = arith.constant dense<0.000000e+00> : vector<16xf32>
    %123 = vector.multi_reduction <add>, %122, %cst_46 [1] : vector<16x128xf32> to vector<16xf32>
    %124 = vector.shape_cast %123 : vector<16xf32> to vector<16x1xf32>
    %cst_47 = arith.constant 1.280000e+02 : f32
    %125 = vector.broadcast %cst_47 : f32 to vector<16x1xf32>
    %126 = arith.divf %124, %125 : vector<16x1xf32>
    %cst_48 = arith.constant 9.99999974E-6 : f32
    %127 = vector.broadcast %cst_48 : f32 to vector<16x1xf32>
    %128 = arith.addf %126, %127 : vector<16x1xf32>
    %129 = math.rsqrt %128 : vector<16x1xf32>
    %130 = vector.broadcast %129 : vector<16x1xf32> to vector<16x128xf32>
    %131 = arith.mulf %121, %130 : vector<16x128xf32>
    %132 = vector.broadcast %113 : vector<1x128xf32> to vector<16x128xf32>
    %133 = arith.mulf %131, %132 : vector<16x128xf32>
    %134 = vector.broadcast %115 : vector<1x128xf32> to vector<16x128xf32>
    %135 = arith.addf %133, %134 : vector<16x128xf32>
    %136 = arith.truncf %135 : vector<16x128xf32> to vector<16x128xbf16>
    %c0_49 = arith.constant 0 : index
    %c0_50 = arith.constant 0 : index
    %c0_51 = arith.constant 0 : index
    %137 = vector.load %arg10[%c0_49, %c0_50, %c0_51] : memref<1x128x256xbf16, #tpu.memory_space<vmem>>, vector<1x128x256xbf16>
    %138 = vector.shape_cast %137 : vector<1x128x256xbf16> to vector<128x256xbf16>
    %cst_52 = arith.constant dense<0.000000e+00> : vector<16x256xf32>
    %139 = tpu.matmul %136, %138, %cst_52 {dimension_numbers = #tpu.dot_dimension_numbers<[1], [0], [0], [1], [0, 0, 1, 1], [], []>} : vector<16x128xbf16>, vector<128x256xbf16>, vector<16x256xf32> -> vector<16x256xf32>
    %c0_53 = arith.constant 0 : index
    %c0_54 = arith.constant 0 : index
    %c0_55 = arith.constant 0 : index
    %140 = vector.load %arg11[%c0_53, %c0_54, %c0_55] : memref<1x1x256xf32, #tpu.memory_space<vmem>>, vector<1x1x256xf32>
    %141 = vector.shape_cast %140 : vector<1x1x256xf32> to vector<1x256xf32>
    %142 = vector.broadcast %141 : vector<1x256xf32> to vector<16x256xf32>
    %143 = arith.addf %139, %142 : vector<16x256xf32>
    %cst_56 = arith.constant 0.000000e+00 : f32
    %144 = vector.broadcast %cst_56 : f32 to vector<16x256xf32>
    %145 = arith.maximumf %143, %144 : vector<16x256xf32>
    %146 = arith.truncf %145 : vector<16x256xf32> to vector<16x256xbf16>
    %c0_57 = arith.constant 0 : index
    %c0_58 = arith.constant 0 : index
    %c0_59 = arith.constant 0 : index
    %147 = vector.load %arg12[%c0_57, %c0_58, %c0_59] : memref<1x256x128xbf16, #tpu.memory_space<vmem>>, vector<1x256x128xbf16>
    %148 = vector.shape_cast %147 : vector<1x256x128xbf16> to vector<256x128xbf16>
    %cst_60 = arith.constant dense<0.000000e+00> : vector<16x128xf32>
    %149 = tpu.matmul %146, %148, %cst_60 {dimension_numbers = #tpu.dot_dimension_numbers<[1], [0], [0], [1], [0, 0, 1, 1], [], []>} : vector<16x256xbf16>, vector<256x128xbf16>, vector<16x128xf32> -> vector<16x128xf32>
    %c0_61 = arith.constant 0 : index
    %c0_62 = arith.constant 0 : index
    %c0_63 = arith.constant 0 : index
    %150 = vector.load %arg13[%c0_61, %c0_62, %c0_63] : memref<1x1x128xf32, #tpu.memory_space<vmem>>, vector<1x1x128xf32>
    %151 = vector.shape_cast %150 : vector<1x1x128xf32> to vector<1x128xf32>
    %152 = vector.broadcast %151 : vector<1x128xf32> to vector<16x128xf32>
    %153 = arith.addf %149, %152 : vector<16x128xf32>
    %154 = arith.addf %135, %153 : vector<16x128xf32>
    %c0_64 = arith.constant 0 : index
    %c0_65 = arith.constant 0 : index
    %c0_66 = arith.constant 0 : index
    %155 = vector.load %arg14[%c0_64, %c0_65, %c0_66] : memref<1x1x128xf32, #tpu.memory_space<vmem>>, vector<1x1x128xf32>
    %156 = vector.shape_cast %155 : vector<1x1x128xf32> to vector<1x128xf32>
    %c0_67 = arith.constant 0 : index
    %c0_68 = arith.constant 0 : index
    %c0_69 = arith.constant 0 : index
    %157 = vector.load %arg15[%c0_67, %c0_68, %c0_69] : memref<1x1x128xf32, #tpu.memory_space<vmem>>, vector<1x1x128xf32>
    %158 = vector.shape_cast %157 : vector<1x1x128xf32> to vector<1x128xf32>
    %cst_70 = arith.constant dense<0.000000e+00> : vector<16xf32>
    %159 = vector.multi_reduction <add>, %154, %cst_70 [1] : vector<16x128xf32> to vector<16xf32>
    %160 = vector.shape_cast %159 : vector<16xf32> to vector<16x1xf32>
    %cst_71 = arith.constant 1.280000e+02 : f32
    %161 = vector.broadcast %cst_71 : f32 to vector<16x1xf32>
    %162 = arith.divf %160, %161 : vector<16x1xf32>
    %163 = vector.broadcast %162 : vector<16x1xf32> to vector<16x128xf32>
    %164 = arith.subf %154, %163 : vector<16x128xf32>
    %165 = arith.mulf %164, %164 : vector<16x128xf32>
    %cst_72 = arith.constant dense<0.000000e+00> : vector<16xf32>
    %166 = vector.multi_reduction <add>, %165, %cst_72 [1] : vector<16x128xf32> to vector<16xf32>
    %167 = vector.shape_cast %166 : vector<16xf32> to vector<16x1xf32>
    %cst_73 = arith.constant 1.280000e+02 : f32
    %168 = vector.broadcast %cst_73 : f32 to vector<16x1xf32>
    %169 = arith.divf %167, %168 : vector<16x1xf32>
    %cst_74 = arith.constant 9.99999974E-6 : f32
    %170 = vector.broadcast %cst_74 : f32 to vector<16x1xf32>
    %171 = arith.addf %169, %170 : vector<16x1xf32>
    %172 = math.rsqrt %171 : vector<16x1xf32>
    %173 = vector.broadcast %172 : vector<16x1xf32> to vector<16x128xf32>
    %174 = arith.mulf %164, %173 : vector<16x128xf32>
    %175 = vector.broadcast %156 : vector<1x128xf32> to vector<16x128xf32>
    %176 = arith.mulf %174, %175 : vector<16x128xf32>
    %177 = vector.broadcast %158 : vector<1x128xf32> to vector<16x128xf32>
    %178 = arith.addf %176, %177 : vector<16x128xf32>
    %c0_75 = arith.constant 0 : index
    %c0_76 = arith.constant 0 : index
    %179 = vector.load %arg19[%c0_75, %c0_76] : memref<16x128xf32, #tpu.memory_space<vmem>>, vector<16x128xf32>
    tpu.vector_store %arg19[%c0_75, %c0_76], %178 {strides = array<i32>} : memref<16x128xf32, #tpu.memory_space<vmem>>, vector<16x128xf32>,
    %c1_i32 = arith.constant 1 : i32
    %180 = arith.cmpi eq, %arg1, %c1_i32 : i32
    %181 = arith.extui %180 : i1 to i32
    %c0_i32_77 = arith.constant 0 : i32
    %182 = arith.cmpi ne, %181, %c0_i32_77 : i32
    scf.if %182 {
      %183 = arith.truncf %178 : vector<16x128xf32> to vector<16x128xbf16>
      %c0_78 = arith.constant 0 : index
      %c0_79 = arith.constant 0 : index
      %184 = vector.load %arg16[%c0_78, %c0_79] : memref<128x128xbf16, #tpu.memory_space<vmem>>, vector<128x128xbf16>
      %cst_80 = arith.constant dense<0.000000e+00> : vector<16x128xf32>
      %185 = tpu.matmul %183, %184, %cst_80 {dimension_numbers = #tpu.dot_dimension_numbers<[1], [0], [0], [1], [0, 0, 1, 1], [], []>} : vector<16x128xbf16>, vector<128x128xbf16>, vector<16x128xf32> -> vector<16x128xf32>
      %c0_81 = arith.constant 0 : index
      %c0_82 = arith.constant 0 : index
      %186 = vector.load %arg17[%c0_81, %c0_82] : memref<1x128xf32, #tpu.memory_space<vmem>>, vector<1x128xf32>
      %187 = vector.broadcast %186 : vector<1x128xf32> to vector<16x128xf32>
      %188 = arith.addf %185, %187 : vector<16x128xf32>
      %c0_83 = arith.constant 0 : index
      %c0_84 = arith.constant 0 : index
      %189 = vector.load %arg18[%c0_83, %c0_84] : memref<16x128xf32, #tpu.memory_space<vmem>>, vector<16x128xf32>
      tpu.vector_store %arg18[%c0_83, %c0_84], %188 {strides = array<i32>} : memref<16x128xf32, #tpu.memory_space<vmem>>, vector<16x128xf32>,
    } else {
    }
    return
  }
  func.func @transform_0(%arg0: i32, %arg1: i32) -> (i32, i32) {
    %c0_i32 = arith.constant 0 : i32
    %c0_i32_0 = arith.constant 0 : i32
    return %arg0, %c0_i32 : i32, i32
  }
  func.func @transform_1(%arg0: i32, %arg1: i32) -> (i32, i32) {
    %c0_i32 = arith.constant 0 : i32
    %c0_i32_0 = arith.constant 0 : i32
    return %arg0, %c0_i32 : i32, i32
  }
  func.func @transform_2(%arg0: i32, %arg1: i32) -> (i32, i32, i32) {
    %c0_i32 = arith.constant 0 : i32
    %c0_i32_0 = arith.constant 0 : i32
    %c0_i32_1 = arith.constant 0 : i32
    return %arg1, %c0_i32, %c0_i32_0 : i32, i32, i32
  }
  func.func @transform_3(%arg0: i32, %arg1: i32) -> (i32, i32, i32) {
    %c0_i32 = arith.constant 0 : i32
    %c0_i32_0 = arith.constant 0 : i32
    %c0_i32_1 = arith.constant 0 : i32
    return %arg1, %c0_i32, %c0_i32_0 : i32, i32, i32
  }
  func.func @transform_4(%arg0: i32, %arg1: i32) -> (i32, i32, i32) {
    %c0_i32 = arith.constant 0 : i32
    %c0_i32_0 = arith.constant 0 : i32
    %c0_i32_1 = arith.constant 0 : i32
    return %arg1, %c0_i32, %c0_i32_0 : i32, i32, i32
  }
  func.func @transform_5(%arg0: i32, %arg1: i32) -> (i32, i32, i32) {
    %c0_i32 = arith.constant 0 : i32
    %c0_i32_0 = arith.constant 0 : i32
    %c0_i32_1 = arith.constant 0 : i32
    return %arg1, %c0_i32, %c0_i32_0 : i32, i32, i32
  }
  func.func @transform_6(%arg0: i32, %arg1: i32) -> (i32, i32, i32) {
    %c0_i32 = arith.constant 0 : i32
    %c0_i32_0 = arith.constant 0 : i32
    %c0_i32_1 = arith.constant 0 : i32
    return %arg1, %c0_i32, %c0_i32_0 : i32, i32, i32
  }
  func.func @transform_7(%arg0: i32, %arg1: i32) -> (i32, i32, i32) {
    %c0_i32 = arith.constant 0 : i32
    %c0_i32_0 = arith.constant 0 : i32
    %c0_i32_1 = arith.constant 0 : i32
    return %arg1, %c0_i32, %c0_i32_0 : i32, i32, i32
  }
  func.func @transform_8(%arg0: i32, %arg1: i32) -> (i32, i32, i32) {
    %c0_i32 = arith.constant 0 : i32
    %c0_i32_0 = arith.constant 0 : i32
    %c0_i32_1 = arith.constant 0 : i32
    return %arg1, %c0_i32, %c0_i32_0 : i32, i32, i32
  }
  func.func @transform_9(%arg0: i32, %arg1: i32) -> (i32, i32, i32) {
    %c0_i32 = arith.constant 0 : i32
    %c0_i32_0 = arith.constant 0 : i32
    %c0_i32_1 = arith.constant 0 : i32
    return %arg1, %c0_i32, %c0_i32_0 : i32, i32, i32
  }
  func.func @transform_10(%arg0: i32, %arg1: i32) -> (i32, i32, i32) {
    %c0_i32 = arith.constant 0 : i32
    %c0_i32_0 = arith.constant 0 : i32
    %c0_i32_1 = arith.constant 0 : i32
    return %arg1, %c0_i32, %c0_i32_0 : i32, i32, i32
  }
  func.func @transform_11(%arg0: i32, %arg1: i32) -> (i32, i32, i32) {
    %c0_i32 = arith.constant 0 : i32
    %c0_i32_0 = arith.constant 0 : i32
    %c0_i32_1 = arith.constant 0 : i32
    return %arg1, %c0_i32, %c0_i32_0 : i32, i32, i32
  }
  func.func @transform_12(%arg0: i32, %arg1: i32) -> (i32, i32, i32) {
    %c0_i32 = arith.constant 0 : i32
    %c0_i32_0 = arith.constant 0 : i32
    %c0_i32_1 = arith.constant 0 : i32
    return %arg1, %c0_i32, %c0_i32_0 : i32, i32, i32
  }
  func.func @transform_13(%arg0: i32, %arg1: i32) -> (i32, i32, i32) {
    %c0_i32 = arith.constant 0 : i32
    %c0_i32_0 = arith.constant 0 : i32
    %c0_i32_1 = arith.constant 0 : i32
    return %arg1, %c0_i32, %c0_i32_0 : i32, i32, i32
  }
  func.func @transform_14(%arg0: i32, %arg1: i32) -> (i32, i32) {
    %c0_i32 = arith.constant 0 : i32
    %c0_i32_0 = arith.constant 0 : i32
    %c0_i32_1 = arith.constant 0 : i32
    return %c0_i32, %c0_i32_0 : i32, i32
  }
  func.func @transform_15(%arg0: i32, %arg1: i32) -> (i32, i32) {
    %c0_i32 = arith.constant 0 : i32
    %c0_i32_0 = arith.constant 0 : i32
    %c0_i32_1 = arith.constant 0 : i32
    return %c0_i32, %c0_i32_0 : i32, i32
  }
  func.func @transform_16(%arg0: i32, %arg1: i32) -> (i32, i32) {
    %c0_i32 = arith.constant 0 : i32
    %c0_i32_0 = arith.constant 0 : i32
    return %arg0, %c0_i32 : i32, i32
  }
}

</mosaic_0001>

<llo_original>
// kernel: tpu_custom_call.1
$region0: #{tpu_custom_call.1}
  #allocation0 [shape = 'u32[]', space=smem, size = 0x4, offset = 0x4, fixed_abs, tag = 'smem constant byte address 0x4 - core index']
  #allocation1 [shape = 'u32[72,128]{1,0:T(1,128)}', space=vmem, size = 0x9000, scoped, tag = 'internal scratch']
  #allocation2 [shape = 'f32[16,128]{1,0:T(8,128)}', space=vmem, size = 0x2000, scoped, tag = 'scratch operand']
  #allocation3 [shape = 'f32[16,128]{1,0:T(8,128)}', space=vmem, size = 0x2000, scoped, tag = 'scratch operand']
  %s0 = inlined_call_operand.hbm [shape: f32[16,128], index: 0, kind: input, shape index: {}]
  %s1 = inlined_call_operand.hbm [shape: f32[16,128], index: 1, kind: input, shape index: {}]
  %s2 = inlined_call_operand.hbm [shape: bf16[2,128,384], index: 2, kind: input, shape index: {}]
  %s3 = inlined_call_operand.hbm [shape: f32[2,1,384], index: 3, kind: input, shape index: {}]
  %s4 = inlined_call_operand.hbm [shape: bf16[2,128,128], index: 4, kind: input, shape index: {}]
  %s5 = inlined_call_operand.vmem [shape: f32[2,1,128], index: 5, kind: input, shape index: {}]
  %s6 = inlined_call_operand.hbm [shape: f32[2,1,128], index: 6, kind: input, shape index: {}]
  %s7 = inlined_call_operand.hbm [shape: f32[2,1,128], index: 7, kind: input, shape index: {}]
  %s8 = inlined_call_operand.hbm [shape: bf16[2,128,256], index: 8, kind: input, shape index: {}]
  %s9 = inlined_call_operand.vmem [shape: f32[2,1,256], index: 9, kind: input, shape index: {}]
  %s10 = inlined_call_operand.hbm [shape: bf16[2,256,128], index: 10, kind: input, shape index: {}]
  %s11 = inlined_call_operand.vmem [shape: f32[2,1,128], index: 11, kind: input, shape index: {}]
  %s12 = inlined_call_operand.vmem [shape: f32[2,1,128], index: 12, kind: input, shape index: {}]
  %s13 = inlined_call_operand.vmem [shape: f32[2,1,128], index: 13, kind: input, shape index: {}]
  %s14 = inlined_call_operand.hbm [shape: bf16[128,128], index: 14, kind: input, shape index: {}]
  %s15 = inlined_call_operand.vmem [shape: f32[1,128], index: 15, kind: input, shape index: {}]
  %s16 = inlined_call_operand.hbm [shape: f32[16,128], index: 16, kind: output, shape index: {}]
  %s17 = sld [smem:[#allocation0]]
  $region145: #{tpu_custom_call.1} parent=0
    _
  %s19 = ssub.s32 1, %s17
  %s20 = scalar_select 0, %s19, %s17
  $region1: #{tpu_custom_call.1} parent=0
    #allocation4 [shape = 'u8[8192]{0}', space=vmem, size = 0x2000, scoped, tag = 'input window, operand 0, single buffered']
    #allocation5 [shape = 's32[2]{0}', space=sflag, size = 0x8, scoped, tag = 'scoped memory for tpu_custom_call.1']
    #allocation6 [shape = 's32[2]{0}', space=sflag, size = 0x8, scoped, tag = 'scoped memory for tpu_custom_call.1']
    #allocation7 [shape = 'u8[8192]{0}', space=vmem, size = 0x2000, scoped, tag = 'input window, operand 1, single buffered']
    #allocation8 [shape = 's32[1]{0}', space=sflag, size = 0x4, scoped, tag = 'scoped memory for tpu_custom_call.1']
    #allocation9 [shape = 'u8[196608]{0}', space=vmem, size = 0x30000, scoped, tag = 'input window, operand 2']
    #allocation10 [shape = 'u8[3072]{0}', space=vmem, size = 0xc00, scoped, tag = 'input window, operand 3']
    #allocation11 [shape = 'u8[65536]{0}', space=vmem, size = 0x10000, scoped, tag = 'input window, operand 4']
    #allocation12 [shape = 'u8[1024]{0}', space=vmem, size = 0x400, scoped, tag = 'input window, operand 6']
    #allocation13 [shape = 'u8[1024]{0}', space=vmem, size = 0x400, scoped, tag = 'input window, operand 7']
    #allocation14 [shape = 'u8[131072]{0}', space=vmem, size = 0x20000, scoped, tag = 'input window, operand 8']
    #allocation15 [shape = 'u8[131072]{0}', space=vmem, size = 0x20000, scoped, tag = 'input window, operand 10']
    #allocation16 [shape = 'u8[32768]{0}', space=vmem, size = 0x8000, scoped, tag = 'input window, operand 14, single buffered']
    #allocation17 [shape = 'u8[8192]{0}', space=vmem, size = 0x2000, scoped, tag = 'output window, operand 0, single buffered']
    %21 = vsyncpa [#allocation5], 0
    %22 = vsyncpa [#allocation8], 0
    %23 = vsyncpa [#allocation6], 0
    loop: start=0, step=1, limit=4
    $region2: #{tpu_custom_call.1} parent=1 // loop_pre_header
      _
    $region3: #{tpu_custom_call.1} parent=1 // loop_header
      %s25 = sphi 0, %s29
      %p26 = scmp.ge.s32.totalorder %s25, 4
      %s32 = sphi 0, %s44
      %s33 = sphi 0, %s40
      %s34 = sphi 0, %s32
      %s35 = sphi 0, %s33
      %s36 = sphi 0, %s34
      %s37 = sphi 0, %s35
      %s47 = sphi 0, %s49
      %s50 = sphi 0, %s47
      %s51 = sphi 0, %s50
      %s67 = sphi 0, %s51
      %s73 = sphi 0, %s75
      %s76 = sphi 0, %s73
      %s77 = sphi 0, %s76
      %s93 = sphi 0, %s77
      %s99 = sphi 0, %s101
      %s102 = sphi 0, %s99
      %s103 = sphi 0, %s102
      %s119 = sphi 0, %s103
      %s125 = sphi 0, %s127
      %s128 = sphi 0, %s125
      %s129 = sphi 0, %s128
      %s145 = sphi 0, %s129
      %s151 = sphi 0, %s153
      %s154 = sphi 0, %s151
      %s155 = sphi 0, %s154
      %s171 = sphi 0, %s155
      %s177 = sphi 0, %s179
      %s180 = sphi 0, %s177
      %s181 = sphi 0, %s180
      %s197 = sphi 0, %s181
      %s203 = sphi 0, %s205
      %s206 = sphi 0, %s203
      %s207 = sphi 0, %s206
      %s223 = sphi 0, %s207
      %s229 = sphi 0, %s231
      %s232 = sphi 0, %s229
      %s233 = sphi 0, %s232
      %s249 = sphi 0, %s233
      %s255 = sphi 0, %s257
      %s258 = sphi 0, %s255
      %s259 = sphi 0, %s258
      %s275 = sphi 0, %s259
      %s281 = sphi 0, %s283
      %s284 = sphi 0, %s281
      %s285 = sphi 0, %s284
      %s301 = sphi 0, %s285
      %s307 = sphi 0, %s309
      %s310 = sphi 0, %s307
      %s311 = sphi 0, %s310
      %s327 = sphi 0, %s311
      %s333 = sphi 0, %s335
      %s336 = sphi 0, %s333
      %s337 = sphi 0, %s336
      %s353 = sphi 0, %s337
      %s359 = sphi 0, %s361
      %s362 = sphi 0, %s359
      %s363 = sphi 0, %s362
      %s379 = sphi 0, %s363
      %s385 = sphi 0, %s387
      %s388 = sphi 0, %s385
      %s389 = sphi 0, %s388
      %s405 = sphi 0, %s389
      %s409 = sphi 0, %s409
      %s411 = sphi 0, %s409
      %s412 = sphi 0, %s411
      %s426 = sphi 0, %s412
      %s430 = sphi 0, %s430
      %s432 = sphi 0, %s430
      %s433 = sphi 0, %s432
      %s447 = sphi 0, %s433
      %s453 = sphi 0, %s455
      %s456 = sphi 0, %s453
      %s457 = sphi 0, %s456
      %s473 = sphi 0, %s457
    $region4: #{tpu_custom_call.1} parent=1 // loop_header_branch
      %28 = sbr.rel (%p26) target = $region8
    $region5: #{tpu_custom_call.1} parent=1 // loop_body
      %s30 = ssub.s32 %s25, 1
      %s31 = ssub.s32 %s25, 2
      %s38 = sadd.s32 1, %s33
      %p39 = scmp.ge.s32.totalorder %s38, 2
      %s40 = scalar_select %p39, 0, %s38
      %s41 = sadd.s32 1, %s32
      %s42 = scalar_select %p39, %s41, %s32
      %p43 = scmp.ge.s32.totalorder %s42, 1
      %s44 = scalar_select %p43, 0, %s42
      %s45 = ssub.s32 %s32, %s44
      %p46 = scmp.eq.s32.totalorder %s45, 0
      %s48 = sadd.s32 %s47, 1
      %s49 = scalar_select %p46, %s47, %s48
      %p52 = pneg %p46
      %p53 = scmp.eq.s32.totalorder %s25, 1
      %p54 = por %p52, %p53
      %p55 = scmp.ne.s32.totalorder %s47, %s50
      %p56 = scmp.eq.s32.totalorder %s25, 0
      %p57 = por %p55, %p56
      %p58 = scmp.ne.s32.totalorder %s47, %s50
      %p59 = scmp.eq.s32.totalorder %s30, 1
      %p60 = por %p58, %p59
      %p61 = scmp.ne.s32.totalorder %s50, %s51
      %p62 = scmp.eq.s32.totalorder %s30, 0
      %p63 = por %p61, %p62
      %p64 = scmp.ne.s32.totalorder %s50, %s51
      %p65 = scmp.eq.s32.totalorder %s31, 1
      %p66 = por %p64, %p65
      %p68 = scmp.ne.s32.totalorder %s51, %s67
      %p69 = scmp.eq.s32.totalorder %s31, 0
      %p70 = por %p68, %p69
      %s71 = ssub.s32 %s32, %s44
      %p72 = scmp.eq.s32.totalorder %s71, 0
      %s74 = sadd.s32 %s73, 1
      %s75 = scalar_select %p72, %s73, %s74
      %p78 = pneg %p72
      %p79 = scmp.eq.s32.totalorder %s25, 1
      %p80 = por %p78, %p79
      %p81 = scmp.ne.s32.totalorder %s73, %s76
      %p82 = scmp.eq.s32.totalorder %s25, 0
      %p83 = por %p81, %p82
      %p84 = scmp.ne.s32.totalorder %s73, %s76
      %p85 = scmp.eq.s32.totalorder %s30, 1
      %p86 = por %p84, %p85
      %p87 = scmp.ne.s32.totalorder %s76, %s77
      %p88 = scmp.eq.s32.totalorder %s30, 0
      %p89 = por %p87, %p88
      %p90 = scmp.ne.s32.totalorder %s76, %s77
      %p91 = scmp.eq.s32.totalorder %s31, 1
      %p92 = por %p90, %p91
      %p94 = scmp.ne.s32.totalorder %s77, %s93
      %p95 = scmp.eq.s32.totalorder %s31, 0
      %p96 = por %p94, %p95
      %s97 = ssub.s32 %s33, %s40
      %p98 = scmp.eq.s32.totalorder %s97, 0
      %s100 = sadd.s32 %s99, 1
      %s101 = scalar_select %p98, %s99, %s100
      %p104 = pneg %p98
      %p105 = scmp.eq.s32.totalorder %s25, 1
      %p106 = por %p104, %p105
      %p107 = scmp.ne.s32.totalorder %s99, %s102
      %p108 = scmp.eq.s32.totalorder %s25, 0
      %p109 = por %p107, %p108
      %p110 = scmp.ne.s32.totalorder %s99, %s102
      %p111 = scmp.eq.s32.totalorder %s30, 1
      %p112 = por %p110, %p111
      %p113 = scmp.ne.s32.totalorder %s102, %s103
      %p114 = scmp.eq.s32.totalorder %s30, 0
      %p115 = por %p113, %p114
      %p116 = scmp.ne.s32.totalorder %s102, %s103
      %p117 = scmp.eq.s32.totalorder %s31, 1
      %p118 = por %p116, %p117
      %p120 = scmp.ne.s32.totalorder %s103, %s119
      %p121 = scmp.eq.s32.totalorder %s31, 0
      %p122 = por %p120, %p121
      %s123 = ssub.s32 %s33, %s40
      %p124 = scmp.eq.s32.totalorder %s123, 0
      %s126 = sadd.s32 %s125, 1
      %s127 = scalar_select %p124, %s125, %s126
      %p130 = pneg %p124
      %p131 = scmp.eq.s32.totalorder %s25, 1
      %p132 = por %p130, %p131
      %p133 = scmp.ne.s32.totalorder %s125, %s128
      %p134 = scmp.eq.s32.totalorder %s25, 0
      %p135 = por %p133, %p134
      %p136 = scmp.ne.s32.totalorder %s125, %s128
      %p137 = scmp.eq.s32.totalorder %s30, 1
      %p138 = por %p136, %p137
      %p139 = scmp.ne.s32.totalorder %s128, %s129
      %p140 = scmp.eq.s32.totalorder %s30, 0
      %p141 = por %p139, %p140
      %p142 = scmp.ne.s32.totalorder %s128, %s129
      %p143 = scmp.eq.s32.totalorder %s31, 1
      %p144 = por %p142, %p143
      %p146 = scmp.ne.s32.totalorder %s129, %s145
      %p147 = scmp.eq.s32.totalorder %s31, 0
      %p148 = por %p146, %p147
      %s149 = ssub.s32 %s33, %s40
      %p150 = scmp.eq.s32.totalorder %s149, 0
      %s152 = sadd.s32 %s151, 1
      %s153 = scalar_select %p150, %s151, %s152
      %p156 = pneg %p150
      %p157 = scmp.eq.s32.totalorder %s25, 1
      %p158 = por %p156, %p157
      %p159 = scmp.ne.s32.totalorder %s151, %s154
      %p160 = scmp.eq.s32.totalorder %s25, 0
      %p161 = por %p159, %p160
      %p162 = scmp.ne.s32.totalorder %s151, %s154
      %p163 = scmp.eq.s32.totalorder %s30, 1
      %p164 = por %p162, %p163
      %p165 = scmp.ne.s32.totalorder %s154, %s155
      %p166 = scmp.eq.s32.totalorder %s30, 0
      %p167 = por %p165, %p166
      %p168 = scmp.ne.s32.totalorder %s154, %s155
      %p169 = scmp.eq.s32.totalorder %s31, 1
      %p170 = por %p168, %p169
      %p172 = scmp.ne.s32.totalorder %s155, %s171
      %p173 = scmp.eq.s32.totalorder %s31, 0
      %p174 = por %p172, %p173
      %s175 = ssub.s32 %s33, %s40
      %p176 = scmp.eq.s32.totalorder %s175, 0
      %s178 = sadd.s32 %s177, 1
      %s179 = scalar_select %p176, %s177, %s178
      %p182 = pneg %p176
      %p183 = scmp.eq.s32.totalorder %s25, 1
      %p184 = por %p182, %p183
      %p185 = scmp.ne.s32.totalorder %s177, %s180
      %p186 = scmp.eq.s32.totalorder %s25, 0
      %p187 = por %p185, %p186
      %p188 = scmp.ne.s32.totalorder %s177, %s180
      %p189 = scmp.eq.s32.totalorder %s30, 1
      %p190 = por %p188, %p189
      %p191 = scmp.ne.s32.totalorder %s180, %s181
      %p192 = scmp.eq.s32.totalorder %s30, 0
      %p193 = por %p191, %p192
      %p194 = scmp.ne.s32.totalorder %s180, %s181
      %p195 = scmp.eq.s32.totalorder %s31, 1
      %p196 = por %p194, %p195
      %p198 = scmp.ne.s32.totalorder %s181, %s197
      %p199 = scmp.eq.s32.totalorder %s31, 0
      %p200 = por %p198, %p199
      %s201 = ssub.s32 %s33, %s40
      %p202 = scmp.eq.s32.totalorder %s201, 0
      %s204 = sadd.s32 %s203, 1
      %s205 = scalar_select %p202, %s203, %s204
      %p208 = pneg %p202
      %p209 = scmp.eq.s32.totalorder %s25, 1
      %p210 = por %p208, %p209
      %p211 = scmp.ne.s32.totalorder %s203, %s206
      %p212 = scmp.eq.s32.totalorder %s25, 0
      %p213 = por %p211, %p212
      %p214 = scmp.ne.s32.totalorder %s203, %s206
      %p215 = scmp.eq.s32.totalorder %s30, 1
      %p216 = por %p214, %p215
      %p217 = scmp.ne.s32.totalorder %s206, %s207
      %p218 = scmp.eq.s32.totalorder %s30, 0
      %p219 = por %p217, %p218
      %p220 = scmp.ne.s32.totalorder %s206, %s207
      %p221 = scmp.eq.s32.totalorder %s31, 1
      %p222 = por %p220, %p221
      %p224 = scmp.ne.s32.totalorder %s207, %s223
      %p225 = scmp.eq.s32.totalorder %s31, 0
      %p226 = por %p224, %p225
      %s227 = ssub.s32 %s33, %s40
      %p228 = scmp.eq.s32.totalorder %s227, 0
      %s230 = sadd.s32 %s229, 1
      %s231 = scalar_select %p228, %s229, %s230
      %p234 = pneg %p228
      %p235 = scmp.eq.s32.totalorder %s25, 1
      %p236 = por %p234, %p235
      %p237 = scmp.ne.s32.totalorder %s229, %s232
      %p238 = scmp.eq.s32.totalorder %s25, 0
      %p239 = por %p237, %p238
      %p240 = scmp.ne.s32.totalorder %s229, %s232
      %p241 = scmp.eq.s32.totalorder %s30, 1
      %p242 = por %p240, %p241
      %p243 = scmp.ne.s32.totalorder %s232, %s233
      %p244 = scmp.eq.s32.totalorder %s30, 0
      %p245 = por %p243, %p244
      %p246 = scmp.ne.s32.totalorder %s232, %s233
      %p247 = scmp.eq.s32.totalorder %s31, 1
      %p248 = por %p246, %p247
      %p250 = scmp.ne.s32.totalorder %s233, %s249
      %p251 = scmp.eq.s32.totalorder %s31, 0
      %p252 = por %p250, %p251
      %s253 = ssub.s32 %s33, %s40
      %p254 = scmp.eq.s32.totalorder %s253, 0
      %s256 = sadd.s32 %s255, 1
      %s257 = scalar_select %p254, %s255, %s256
      %p260 = pneg %p254
      %p261 = scmp.eq.s32.totalorder %s25, 1
      %p262 = por %p260, %p261
      %p263 = scmp.ne.s32.totalorder %s255, %s258
      %p264 = scmp.eq.s32.totalorder %s25, 0
      %p265 = por %p263, %p264
      %p266 = scmp.ne.s32.totalorder %s255, %s258
      %p267 = scmp.eq.s32.totalorder %s30, 1
      %p268 = por %p266, %p267
      %p269 = scmp.ne.s32.totalorder %s258, %s259
      %p270 = scmp.eq.s32.totalorder %s30, 0
      %p271 = por %p269, %p270
      %p272 = scmp.ne.s32.totalorder %s258, %s259
      %p273 = scmp.eq.s32.totalorder %s31, 1
      %p274 = por %p272, %p273
      %p276 = scmp.ne.s32.totalorder %s259, %s275
      %p277 = scmp.eq.s32.totalorder %s31, 0
      %p278 = por %p276, %p277
      %s279 = ssub.s32 %s33, %s40
      %p280 = scmp.eq.s32.totalorder %s279, 0
      %s282 = sadd.s32 %s281, 1
      %s283 = scalar_select %p280, %s281, %s282
      %p286 = pneg %p280
      %p287 = scmp.eq.s32.totalorder %s25, 1
      %p288 = por %p286, %p287
      %p289 = scmp.ne.s32.totalorder %s281, %s284
      %p290 = scmp.eq.s32.totalorder %s25, 0
      %p291 = por %p289, %p290
      %p292 = scmp.ne.s32.totalorder %s281, %s284
      %p293 = scmp.eq.s32.totalorder %s30, 1
      %p294 = por %p292, %p293
      %p295 = scmp.ne.s32.totalorder %s284, %s285
      %p296 = scmp.eq.s32.totalorder %s30, 0
      %p297 = por %p295, %p296
      %p298 = scmp.ne.s32.totalorder %s284, %s285
      %p299 = scmp.eq.s32.totalorder %s31, 1
      %p300 = por %p298, %p299
      %p302 = scmp.ne.s32.totalorder %s285, %s301
      %p303 = scmp.eq.s32.totalorder %s31, 0
      %p304 = por %p302, %p303
      %s305 = ssub.s32 %s33, %s40
      %p306 = scmp.eq.s32.totalorder %s305, 0
      %s308 = sadd.s32 %s307, 1
      %s309 = scalar_select %p306, %s307, %s308
      %p312 = pneg %p306
      %p313 = scmp.eq.s32.totalorder %s25, 1
      %p314 = por %p312, %p313
      %p315 = scmp.ne.s32.totalorder %s307, %s310
      %p316 = scmp.eq.s32.totalorder %s25, 0
      %p317 = por %p315, %p316
      %p318 = scmp.ne.s32.totalorder %s307, %s310
      %p319 = scmp.eq.s32.totalorder %s30, 1
      %p320 = por %p318, %p319
      %p321 = scmp.ne.s32.totalorder %s310, %s311
      %p322 = scmp.eq.s32.totalorder %s30, 0
      %p323 = por %p321, %p322
      %p324 = scmp.ne.s32.totalorder %s310, %s311
      %p325 = scmp.eq.s32.totalorder %s31, 1
      %p326 = por %p324, %p325
      %p328 = scmp.ne.s32.totalorder %s311, %s327
      %p329 = scmp.eq.s32.totalorder %s31, 0
      %p330 = por %p328, %p329
      %s331 = ssub.s32 %s33, %s40
      %p332 = scmp.eq.s32.totalorder %s331, 0
      %s334 = sadd.s32 %s333, 1
      %s335 = scalar_select %p332, %s333, %s334
      %p338 = pneg %p332
      %p339 = scmp.eq.s32.totalorder %s25, 1
      %p340 = por %p338, %p339
      %p341 = scmp.ne.s32.totalorder %s333, %s336
      %p342 = scmp.eq.s32.totalorder %s25, 0
      %p343 = por %p341, %p342
      %p344 = scmp.ne.s32.totalorder %s333, %s336
      %p345 = scmp.eq.s32.totalorder %s30, 1
      %p346 = por %p344, %p345
      %p347 = scmp.ne.s32.totalorder %s336, %s337
      %p348 = scmp.eq.s32.totalorder %s30, 0
      %p349 = por %p347, %p348
      %p350 = scmp.ne.s32.totalorder %s336, %s337
      %p351 = scmp.eq.s32.totalorder %s31, 1
      %p352 = por %p350, %p351
      %p354 = scmp.ne.s32.totalorder %s337, %s353
      %p355 = scmp.eq.s32.totalorder %s31, 0
      %p356 = por %p354, %p355
      %s357 = ssub.s32 %s33, %s40
      %p358 = scmp.eq.s32.totalorder %s357, 0
      %s360 = sadd.s32 %s359, 1
      %s361 = scalar_select %p358, %s359, %s360
      %p364 = pneg %p358
      %p365 = scmp.eq.s32.totalorder %s25, 1
      %p366 = por %p364, %p365
      %p367 = scmp.ne.s32.totalorder %s359, %s362
      %p368 = scmp.eq.s32.totalorder %s25, 0
      %p369 = por %p367, %p368
      %p370 = scmp.ne.s32.totalorder %s359, %s362
      %p371 = scmp.eq.s32.totalorder %s30, 1
      %p372 = por %p370, %p371
      %p373 = scmp.ne.s32.totalorder %s362, %s363
      %p374 = scmp.eq.s32.totalorder %s30, 0
      %p375 = por %p373, %p374
      %p376 = scmp.ne.s32.totalorder %s362, %s363
      %p377 = scmp.eq.s32.totalorder %s31, 1
      %p378 = por %p376, %p377
      %p380 = scmp.ne.s32.totalorder %s363, %s379
      %p381 = scmp.eq.s32.totalorder %s31, 0
      %p382 = por %p380, %p381
      %s383 = ssub.s32 %s33, %s40
      %p384 = scmp.eq.s32.totalorder %s383, 0
      %s386 = sadd.s32 %s385, 1
      %s387 = scalar_select %p384, %s385, %s386
      %p390 = pneg %p384
      %p391 = scmp.eq.s32.totalorder %s25, 1
      %p392 = por %p390, %p391
      %p393 = scmp.ne.s32.totalorder %s385, %s388
      %p394 = scmp.eq.s32.totalorder %s25, 0
      %p395 = por %p393, %p394
      %p396 = scmp.ne.s32.totalorder %s385, %s388
      %p397 = scmp.eq.s32.totalorder %s30, 1
      %p398 = por %p396, %p397
      %p399 = scmp.ne.s32.totalorder %s388, %s389
      %p400 = scmp.eq.s32.totalorder %s30, 0
      %p401 = por %p399, %p400
      %p402 = scmp.ne.s32.totalorder %s388, %s389
      %p403 = scmp.eq.s32.totalorder %s31, 1
      %p404 = por %p402, %p403
      %p406 = scmp.ne.s32.totalorder %s389, %s405
      %p407 = scmp.eq.s32.totalorder %s31, 0
      %p408 = por %p406, %p407
      %s410 = sadd.s32 %s409, 1
      %p413 = scmp.eq.s32.totalorder %s25, 1
      %p414 = scmp.ne.s32.totalorder %s409, %s411
      %p415 = scmp.eq.s32.totalorder %s25, 0
      %p416 = por %p414, %p415
      %p417 = scmp.ne.s32.totalorder %s409, %s411
      %p418 = scmp.eq.s32.totalorder %s30, 1
      %p419 = por %p417, %p418
      %p420 = scmp.ne.s32.totalorder %s411, %s412
      %p421 = scmp.eq.s32.totalorder %s30, 0
      %p422 = por %p420, %p421
      %p423 = scmp.ne.s32.totalorder %s411, %s412
      %p424 = scmp.eq.s32.totalorder %s31, 1
      %p425 = por %p423, %p424
      %p427 = scmp.ne.s32.totalorder %s412, %s426
      %p428 = scmp.eq.s32.totalorder %s31, 0
      %p429 = por %p427, %p428
      %s431 = sadd.s32 %s430, 1
      %p434 = scmp.eq.s32.totalorder %s25, 1
      %p435 = scmp.ne.s32.totalorder %s430, %s432
      %p436 = scmp.eq.s32.totalorder %s25, 0
      %p437 = por %p435, %p436
      %p438 = scmp.ne.s32.totalorder %s430, %s432
      %p439 = scmp.eq.s32.totalorder %s30, 1
      %p440 = por %p438, %p439
      %p441 = scmp.ne.s32.totalorder %s432, %s433
      %p442 = scmp.eq.s32.totalorder %s30, 0
      %p443 = por %p441, %p442
      %p444 = scmp.ne.s32.totalorder %s432, %s433
      %p445 = scmp.eq.s32.totalorder %s31, 1
      %p446 = por %p444, %p445
      %p448 = scmp.ne.s32.totalorder %s433, %s447
      %p449 = scmp.eq.s32.totalorder %s31, 0
      %p450 = por %p448, %p449
      %s451 = ssub.s32 %s32, %s44
      %p452 = scmp.eq.s32.totalorder %s451, 0
      %s454 = sadd.s32 %s453, 1
      %s455 = scalar_select %p452, %s453, %s454
      %p458 = pneg %p452
      %p459 = scmp.eq.s32.totalorder %s25, 1
      %p460 = por %p458, %p459
      %p461 = scmp.ne.s32.totalorder %s453, %s456
      %p462 = scmp.eq.s32.totalorder %s25, 0
      %p463 = por %p461, %p462
      %p464 = scmp.ne.s32.totalorder %s453, %s456
      %p465 = scmp.eq.s32.totalorder %s30, 1
      %p466 = por %p464, %p465
      %p467 = scmp.ne.s32.totalorder %s456, %s457
      %p468 = scmp.eq.s32.totalorder %s30, 0
      %p469 = por %p467, %p468
      %p470 = scmp.ne.s32.totalorder %s456, %s457
      %p471 = scmp.eq.s32.totalorder %s31, 1
      %p472 = por %p470, %p471
      %p474 = scmp.ne.s32.totalorder %s457, %s473
      %p475 = scmp.eq.s32.totalorder %s31, 0
      %p476 = por %p474, %p475
      %p477 = scmp.le.s32.totalorder 1, %s25
      %p478 = scmp.lt.s32.totalorder %s25, 3
      %p479 = pnand %p477, %p478
      %p480 = pneg %p479
      // Predicated region
      $region9: #{tpu_custom_call.1} parent=5 // pred_check
        _
      $region10: #{tpu_custom_call.1} parent=5 // pred_check_branch
        %482 = sbr.rel (%p479) target = $region12
      $region11: #{tpu_custom_call.1} parent=5 // pred_region
        %s483 = ssub.s32 %s25, 1
        // Predicated region
        $region13: #{tpu_custom_call.1} parent=11 // pred_check
          %p484 = pneg %p63
        $region14: #{tpu_custom_call.1} parent=11 // pred_check_branch
          %486 = sbr.rel (%p484) target = $region16
        $region15: #{tpu_custom_call.1} parent=11 // pred_region
          %s487 = smul.u32 2, %s34
          %489 = vsyncadd [#allocation5], 0
          %s490 = smul.addr %s487, 8
          %s491 = scalar_lea.hbm %s0, %s490
          %s492 = sshll.u32 %s491, 4
          %s493 = int_to_ptr.hbm [resolvable:$true] %s492
          %s494 = sshll.u32 [#allocation4], 4
          %s495 = int_to_ptr.vmem [resolvable:$true] %s494
          %500 = dma.hbm_to_vmem [thread:$0]  %s493, 256, %s495, [#allocation5], 128, 128, 8
        $region16: #{tpu_custom_call.1} parent=11 // pred_fallthru
          _
        // Predicated region
        $region17: #{tpu_custom_call.1} parent=11 // pred_check
          %p501 = pneg %p89
        $region18: #{tpu_custom_call.1} parent=11 // pred_check_branch
          %503 = sbr.rel (%p501) target = $region20
        $region19: #{tpu_custom_call.1} parent=11 // pred_region
          %s504 = smul.u32 2, %s34
          %506 = vsyncadd [#allocation8], 0
          %s507 = smul.addr %s504, 8
          %s508 = scalar_lea.hbm %s1, %s507
          %s509 = sshll.u32 %s508, 4
          %s510 = int_to_ptr.hbm [resolvable:$true] %s509
          %s511 = sshll.u32 [#allocation7], 4
          %s512 = int_to_ptr.vmem [resolvable:$true] %s511
          %517 = dma.hbm_to_vmem [thread:$0]  %s510, 256, %s512, [#allocation8], 128, 128, 8
        $region20: #{tpu_custom_call.1} parent=11 // pred_fallthru
          _
        // Predicated region
        $region21: #{tpu_custom_call.1} parent=11 // pred_check
          %p518 = pneg %p422
        $region22: #{tpu_custom_call.1} parent=11 // pred_check_branch
          %520 = sbr.rel (%p518) target = $region24
        $region23: #{tpu_custom_call.1} parent=11 // pred_region
          %522 = vsyncadd [#allocation8], 0
          %s523 = sshll.u32 %s14, 4
          %s524 = int_to_ptr.hbm [resolvable:$true] %s523
          %s525 = sshll.u32 [#allocation16], 4
          %s526 = int_to_ptr.vmem [resolvable:$true] %s525
          %531 = dma.hbm_to_vmem [thread:$0]  %s524, 1024, %s526, [#allocation8], 64, 64, 4
        $region24: #{tpu_custom_call.1} parent=11 // pred_fallthru
          _
        // Predicated region
        $region25: #{tpu_custom_call.1} parent=11 // pred_check
          %p532 = pneg %p443
        $region26: #{tpu_custom_call.1} parent=11 // pred_check_branch
          %534 = sbr.rel (%p532) target = $region28
        $region27: #{tpu_custom_call.1} parent=11 // pred_region
          _
        $region28: #{tpu_custom_call.1} parent=11 // pred_fallthru
          _
      $region12: #{tpu_custom_call.1} parent=5 // pred_fallthru
        _
      %p535 = scmp.lt.s32.totalorder %s25, 2
      // Predicated region
      $region29: #{tpu_custom_call.1} parent=5 // pred_check
        %p536 = pneg %p535
      $region30: #{tpu_custom_call.1} parent=5 // pred_check_branch
        %538 = sbr.rel (%p536) target = $region32
      $region31: #{tpu_custom_call.1} parent=5 // pred_region
        // Predicated region
        $region33: #{tpu_custom_call.1} parent=31 // pred_check
          %p539 = pneg %p109
        $region34: #{tpu_custom_call.1} parent=31 // pred_check_branch
          %541 = sbr.rel (%p539) target = $region36
        $region35: #{tpu_custom_call.1} parent=31 // pred_region
          %s542 = sand.u32 %s25, 1
          %s543 = scalar_lea.sflag [#allocation5], %s542
          %s544 = sand.u32 %s99, 1
          %s545 = smul.addr %s544, 192
          %s546 = scalar_lea.vmem [#allocation9], %s545
          %548 = vsyncadd %s543, 0
          %s549 = smul.addr %s33, 48
          %s550 = smul.addr %s549, 4
          %s551 = scalar_lea.hbm %s2, %s550
          %s552 = sshll.u32 %s551, 4
          %s553 = int_to_ptr.hbm [resolvable:$true] %s552
          %s554 = sshll.u32 %s546, 4
          %s555 = int_to_ptr.vmem [resolvable:$true] %s554
          %560 = dma.hbm_to_vmem [thread:$0]  %s553, 3072, %s555, %s543, 192, 192, 12
        $region36: #{tpu_custom_call.1} parent=31 // pred_fallthru
          _
        // Predicated region
        $region37: #{tpu_custom_call.1} parent=31 // pred_check
          %p561 = pneg %p135
        $region38: #{tpu_custom_call.1} parent=31 // pred_check_branch
          %563 = sbr.rel (%p561) target = $region40
        $region39: #{tpu_custom_call.1} parent=31 // pred_region
          %s564 = sand.u32 %s25, 1
          %s565 = scalar_lea.sflag [#allocation5], %s564
          %s566 = sand.u32 %s125, 1
          %s567 = smul.addr %s566, 3
          %s568 = scalar_lea.vmem [#allocation10], %s567
          %570 = vsyncadd %s565, 0
          %s571 = smul.addr %s33, 3
          %s572 = scalar_lea.hbm %s3, %s571
          %s574 = sshll.u32 %s572, 4
          %s575 = int_to_ptr.hbm [resolvable:$true] %s574
          %s576 = sshll.u32 %s568, 4
          %s577 = int_to_ptr.vmem [resolvable:$true] %s576
          %579 = dma.hbm_to_vmem [thread:$0]  %s575, 48, %s577, %s565
        $region40: #{tpu_custom_call.1} parent=31 // pred_fallthru
          _
        // Predicated region
        $region41: #{tpu_custom_call.1} parent=31 // pred_check
          %p580 = pneg %p161
        $region42: #{tpu_custom_call.1} parent=31 // pred_check_branch
          %582 = sbr.rel (%p580) target = $region44
        $region43: #{tpu_custom_call.1} parent=31 // pred_region
          %s583 = sand.u32 %s25, 1
          %s584 = scalar_lea.sflag [#allocation5], %s583
          %s585 = sand.u32 %s151, 1
          %s586 = smul.addr %s585, 64
          %s587 = scalar_lea.vmem [#allocation11], %s586
          %589 = vsyncadd %s584, 0
          %s590 = smul.addr %s33, 16
          %s591 = smul.addr %s590, 4
          %s592 = scalar_lea.hbm %s4, %s591
          %s593 = sshll.u32 %s592, 4
          %s594 = int_to_ptr.hbm [resolvable:$true] %s593
          %s595 = sshll.u32 %s587, 4
          %s596 = int_to_ptr.vmem [resolvable:$true] %s595
          %601 = dma.hbm_to_vmem [thread:$0]  %s594, 1024, %s596, %s584, 64, 64, 4
        $region44: #{tpu_custom_call.1} parent=31 // pred_fallthru
          _
        // Predicated region
        $region45: #{tpu_custom_call.1} parent=31 // pred_check
          %p602 = pneg %p187
        $region46: #{tpu_custom_call.1} parent=31 // pred_check_branch
          %604 = sbr.rel (%p602) target = $region48
        $region47: #{tpu_custom_call.1} parent=31 // pred_region
          %p605 = scmp.lt.s32.totalorder %s33, 1
          %s606 = scalar_select %p605, %s33, 1
          %s607 = scalar_lea.vmem %s5, %s606
        $region48: #{tpu_custom_call.1} parent=31 // pred_fallthru
          _
        // Predicated region
        $region49: #{tpu_custom_call.1} parent=31 // pred_check
          %p608 = pneg %p213
        $region50: #{tpu_custom_call.1} parent=31 // pred_check_branch
          %610 = sbr.rel (%p608) target = $region52
        $region51: #{tpu_custom_call.1} parent=31 // pred_region
          %s611 = sand.u32 %s25, 1
          %s612 = scalar_lea.sflag [#allocation5], %s611
          %s613 = sand.u32 %s203, 1
          %s614 = scalar_lea.vmem [#allocation12], %s613
          %616 = vsyncadd %s612, 0
          %s617 = scalar_lea.hbm %s6, %s33
          %s619 = sshll.u32 %s617, 4
          %s620 = int_to_ptr.hbm [resolvable:$true] %s619
          %s621 = sshll.u32 %s614, 4
          %s622 = int_to_ptr.vmem [resolvable:$true] %s621
          %624 = dma.hbm_to_vmem [thread:$0]  %s620, 16, %s622, %s612
        $region52: #{tpu_custom_call.1} parent=31 // pred_fallthru
          _
        // Predicated region
        $region53: #{tpu_custom_call.1} parent=31 // pred_check
          %p625 = pneg %p239
        $region54: #{tpu_custom_call.1} parent=31 // pred_check_branch
          %627 = sbr.rel (%p625) target = $region56
        $region55: #{tpu_custom_call.1} parent=31 // pred_region
          %s628 = sand.u32 %s25, 1
          %s629 = scalar_lea.sflag [#allocation5], %s628
          %s630 = sand.u32 %s229, 1
          %s631 = scalar_lea.vmem [#allocation13], %s630
          %633 = vsyncadd %s629, 0
          %s634 = scalar_lea.hbm %s7, %s33
          %s636 = sshll.u32 %s634, 4
          %s637 = int_to_ptr.hbm [resolvable:$true] %s636
          %s638 = sshll.u32 %s631, 4
          %s639 = int_to_ptr.vmem [resolvable:$true] %s638
          %641 = dma.hbm_to_vmem [thread:$0]  %s637, 16, %s639, %s629
        $region56: #{tpu_custom_call.1} parent=31 // pred_fallthru
          _
        // Predicated region
        $region57: #{tpu_custom_call.1} parent=31 // pred_check
          %p642 = pneg %p265
        $region58: #{tpu_custom_call.1} parent=31 // pred_check_branch
          %644 = sbr.rel (%p642) target = $region60
        $region59: #{tpu_custom_call.1} parent=31 // pred_region
          %s645 = sand.u32 %s25, 1
          %s646 = scalar_lea.sflag [#allocation5], %s645
          %s647 = sand.u32 %s255, 1
          %s648 = smul.addr %s647, 128
          %s649 = scalar_lea.vmem [#allocation14], %s648
          %651 = vsyncadd %s646, 0
          %s652 = smul.addr %s33, 32
          %s653 = smul.addr %s652, 4
          %s654 = scalar_lea.hbm %s8, %s653
          %s655 = sshll.u32 %s654, 4
          %s656 = int_to_ptr.hbm [resolvable:$true] %s655
          %s657 = sshll.u32 %s649, 4
          %s658 = int_to_ptr.vmem [resolvable:$true] %s657
          %663 = dma.hbm_to_vmem [thread:$0]  %s656, 2048, %s658, %s646, 128, 128, 8
        $region60: #{tpu_custom_call.1} parent=31 // pred_fallthru
          _
        // Predicated region
        $region61: #{tpu_custom_call.1} parent=31 // pred_check
          %p664 = pneg %p291
        $region62: #{tpu_custom_call.1} parent=31 // pred_check_branch
          %666 = sbr.rel (%p664) target = $region64
        $region63: #{tpu_custom_call.1} parent=31 // pred_region
          %p667 = scmp.lt.s32.totalorder %s33, 1
          %s668 = scalar_select %p667, %s33, 1
          %s669 = smul.addr %s668, 2
          %s670 = scalar_lea.vmem %s9, %s669
        $region64: #{tpu_custom_call.1} parent=31 // pred_fallthru
          _
        // Predicated region
        $region65: #{tpu_custom_call.1} parent=31 // pred_check
          %p671 = pneg %p317
        $region66: #{tpu_custom_call.1} parent=31 // pred_check_branch
          %673 = sbr.rel (%p671) target = $region68
        $region67: #{tpu_custom_call.1} parent=31 // pred_region
          %s674 = sand.u32 %s25, 1
          %s675 = scalar_lea.sflag [#allocation5], %s674
          %s676 = sand.u32 %s307, 1
          %s677 = smul.addr %s676, 128
          %s678 = scalar_lea.vmem [#allocation15], %s677
          %680 = vsyncadd %s675, 0
          %s681 = smul.addr %s33, 32
          %s682 = smul.addr %s681, 4
          %s683 = scalar_lea.hbm %s10, %s682
          %s684 = sshll.u32 %s683, 4
          %s685 = int_to_ptr.hbm [resolvable:$true] %s684
          %s686 = sshll.u32 %s678, 4
          %s687 = int_to_ptr.vmem [resolvable:$true] %s686
          %692 = dma.hbm_to_vmem [thread:$0]  %s685, 2048, %s687, %s675, 64, 64, 4
        $region68: #{tpu_custom_call.1} parent=31 // pred_fallthru
          _
        // Predicated region
        $region69: #{tpu_custom_call.1} parent=31 // pred_check
          %p693 = pneg %p343
        $region70: #{tpu_custom_call.1} parent=31 // pred_check_branch
          %695 = sbr.rel (%p693) target = $region72
        $region71: #{tpu_custom_call.1} parent=31 // pred_region
          %p696 = scmp.lt.s32.totalorder %s33, 1
          %s697 = scalar_select %p696, %s33, 1
          %s698 = scalar_lea.vmem %s11, %s697
        $region72: #{tpu_custom_call.1} parent=31 // pred_fallthru
          _
        // Predicated region
        $region73: #{tpu_custom_call.1} parent=31 // pred_check
          %p699 = pneg %p369
        $region74: #{tpu_custom_call.1} parent=31 // pred_check_branch
          %701 = sbr.rel (%p699) target = $region76
        $region75: #{tpu_custom_call.1} parent=31 // pred_region
          %p702 = scmp.lt.s32.totalorder %s33, 1
          %s703 = scalar_select %p702, %s33, 1
          %s704 = scalar_lea.vmem %s12, %s703
        $region76: #{tpu_custom_call.1} parent=31 // pred_fallthru
          _
        // Predicated region
        $region77: #{tpu_custom_call.1} parent=31 // pred_check
          %p705 = pneg %p395
        $region78: #{tpu_custom_call.1} parent=31 // pred_check_branch
          %707 = sbr.rel (%p705) target = $region80
        $region79: #{tpu_custom_call.1} parent=31 // pred_region
          %p708 = scmp.lt.s32.totalorder %s33, 1
          %s709 = scalar_select %p708, %s33, 1
          %s710 = scalar_lea.vmem %s13, %s709
        $region80: #{tpu_custom_call.1} parent=31 // pred_fallthru
          _
      $region32: #{tpu_custom_call.1} parent=5 // pred_fallthru
        _
      %p711 = scmp.le.s32.totalorder 1, %s25
      %p712 = scmp.lt.s32.totalorder %s25, 3
      %p713 = pnand %p711, %p712
      %p714 = pneg %p713
      // Predicated region
      $region81: #{tpu_custom_call.1} parent=5 // pred_check
        _
      $region82: #{tpu_custom_call.1} parent=5 // pred_check_branch
        %716 = sbr.rel (%p713) target = $region84
      $region83: #{tpu_custom_call.1} parent=5 // pred_region
        %s717 = ssub.s32 %s25, 1
        // Predicated region
        $region85: #{tpu_custom_call.1} parent=83 // pred_check
          %p718 = pneg %p63
        $region86: #{tpu_custom_call.1} parent=83 // pred_check_branch
          %720 = sbr.rel (%p718) target = $region88
        $region87: #{tpu_custom_call.1} parent=83 // pred_region
          %722 = dma.done [#allocation5], 256
        $region88: #{tpu_custom_call.1} parent=83 // pred_fallthru
          _
        // Predicated region
        $region89: #{tpu_custom_call.1} parent=83 // pred_check
          %p723 = pneg %p89
        $region90: #{tpu_custom_call.1} parent=83 // pred_check_branch
          %725 = sbr.rel (%p723) target = $region92
        $region91: #{tpu_custom_call.1} parent=83 // pred_region
          %727 = dma.done [#allocation8], 256
        $region92: #{tpu_custom_call.1} parent=83 // pred_fallthru
          _
        %s728 = sand.u32 %s30, 1
        %s729 = scalar_lea.sflag [#allocation5], %s728
        %s730 = sand.u32 %s102, 1
        %s731 = smul.addr %s730, 192
        %s732 = scalar_lea.vmem [#allocation9], %s731
        // Predicated region
        $region93: #{tpu_custom_call.1} parent=83 // pred_check
          %p733 = pneg %p115
        $region94: #{tpu_custom_call.1} parent=83 // pred_check_branch
          %735 = sbr.rel (%p733) target = $region96
        $region95: #{tpu_custom_call.1} parent=83 // pred_region
          %737 = dma.done %s729, 3072
        $region96: #{tpu_custom_call.1} parent=83 // pred_fallthru
          _
        %s738 = sand.u32 %s30, 1
        %s739 = scalar_lea.sflag [#allocation5], %s738
        %s740 = sand.u32 %s128, 1
        %s741 = smul.addr %s740, 3
        %s742 = scalar_lea.vmem [#allocation10], %s741
        // Predicated region
        $region97: #{tpu_custom_call.1} parent=83 // pred_check
          %p743 = pneg %p141
        $region98: #{tpu_custom_call.1} parent=83 // pred_check_branch
          %745 = sbr.rel (%p743) target = $region100
        $region99: #{tpu_custom_call.1} parent=83 // pred_region
          %747 = dma.done %s739, 48
        $region100: #{tpu_custom_call.1} parent=83 // pred_fallthru
          _
        %s748 = sand.u32 %s30, 1
        %s749 = scalar_lea.sflag [#allocation5], %s748
        %s750 = sand.u32 %s154, 1
        %s751 = smul.addr %s750, 64
        %s752 = scalar_lea.vmem [#allocation11], %s751
        // Predicated region
        $region101: #{tpu_custom_call.1} parent=83 // pred_check
          %p753 = pneg %p167
        $region102: #{tpu_custom_call.1} parent=83 // pred_check_branch
          %755 = sbr.rel (%p753) target = $region104
        $region103: #{tpu_custom_call.1} parent=83 // pred_region
          %757 = dma.done %s749, 1024
        $region104: #{tpu_custom_call.1} parent=83 // pred_fallthru
          _
        %s758 = sand.u32 %s30, 1
        %s759 = scalar_lea.sflag [#allocation5], %s758
        %s760 = sand.u32 %s206, 1
        %s761 = scalar_lea.vmem [#allocation12], %s760
        // Predicated region
        $region105: #{tpu_custom_call.1} parent=83 // pred_check
          %p762 = pneg %p219
        $region106: #{tpu_custom_call.1} parent=83 // pred_check_branch
          %764 = sbr.rel (%p762) target = $region108
        $region107: #{tpu_custom_call.1} parent=83 // pred_region
          %766 = dma.done %s759, 16
        $region108: #{tpu_custom_call.1} parent=83 // pred_fallthru
          _
        %s767 = sand.u32 %s30, 1
        %s768 = scalar_lea.sflag [#allocation5], %s767
        %s769 = sand.u32 %s232, 1
        %s770 = scalar_lea.vmem [#allocation13], %s769
        // Predicated region
        $region109: #{tpu_custom_call.1} parent=83 // pred_check
          %p771 = pneg %p245
        $region110: #{tpu_custom_call.1} parent=83 // pred_check_branch
          %773 = sbr.rel (%p771) target = $region112
        $region111: #{tpu_custom_call.1} parent=83 // pred_region
          %775 = dma.done %s768, 16
        $region112: #{tpu_custom_call.1} parent=83 // pred_fallthru
          _
        %s776 = sand.u32 %s30, 1
        %s777 = scalar_lea.sflag [#allocation5], %s776
        %s778 = sand.u32 %s258, 1
        %s779 = smul.addr %s778, 128
        %s780 = scalar_lea.vmem [#allocation14], %s779
        // Predicated region
        $region113: #{tpu_custom_call.1} parent=83 // pred_check
          %p781 = pneg %p271
        $region114: #{tpu_custom_call.1} parent=83 // pred_check_branch
          %783 = sbr.rel (%p781) target = $region116
        $region115: #{tpu_custom_call.1} parent=83 // pred_region
          %785 = dma.done %s777, 2048
        $region116: #{tpu_custom_call.1} parent=83 // pred_fallthru
          _
        %s786 = sand.u32 %s30, 1
        %s787 = scalar_lea.sflag [#allocation5], %s786
        %s788 = sand.u32 %s310, 1
        %s789 = smul.addr %s788, 128
        %s790 = scalar_lea.vmem [#allocation15], %s789
        // Predicated region
        $region117: #{tpu_custom_call.1} parent=83 // pred_check
          %p791 = pneg %p323
        $region118: #{tpu_custom_call.1} parent=83 // pred_check_branch
          %793 = sbr.rel (%p791) target = $region120
        $region119: #{tpu_custom_call.1} parent=83 // pred_region
          %795 = dma.done %s787, 2048
        $region120: #{tpu_custom_call.1} parent=83 // pred_fallthru
          _
        // Predicated region
        $region121: #{tpu_custom_call.1} parent=83 // pred_check
          %p796 = pneg %p422
        $region122: #{tpu_custom_call.1} parent=83 // pred_check_branch
          %798 = sbr.rel (%p796) target = $region124
        $region123: #{tpu_custom_call.1} parent=83 // pred_region
          %800 = dma.done [#allocation8], 1024
        $region124: #{tpu_custom_call.1} parent=83 // pred_fallthru
          _
        %p801 = pneg %p63
        %p802 = pneg %p60
        %p803 = pneg %p89
        %p804 = pneg %p86
        %s805 = sand.u32 %s30, 1
        %s806 = scalar_lea.sflag [#allocation5], %s805
        %s807 = sand.u32 %s102, 1
        %s808 = smul.addr %s807, 192
        %s809 = scalar_lea.vmem [#allocation9], %s808
        %p810 = pneg %p115
        %p811 = pneg %p112
        %s812 = sand.u32 %s30, 1
        %s813 = scalar_lea.sflag [#allocation5], %s812
        %s814 = sand.u32 %s128, 1
        %s815 = smul.addr %s814, 3
        %s816 = scalar_lea.vmem [#allocation10], %s815
        %p817 = pneg %p141
        %p818 = pneg %p138
        %s819 = sand.u32 %s30, 1
        %s820 = scalar_lea.sflag [#allocation5], %s819
        %s821 = sand.u32 %s154, 1
        %s822 = smul.addr %s821, 64
        %s823 = scalar_lea.vmem [#allocation11], %s822
        %p824 = pneg %p167
        %p825 = pneg %p164
        %p826 = scmp.lt.s32.totalorder %s35, 1
        %s827 = scalar_select %p826, %s35, 1
        %s828 = scalar_lea.vmem %s5, %s827
        %p829 = pneg %p193
        %p830 = pneg %p190
        %s831 = sand.u32 %s30, 1
        %s832 = scalar_lea.sflag [#allocation5], %s831
        %s833 = sand.u32 %s206, 1
        %s834 = scalar_lea.vmem [#allocation12], %s833
        %p835 = pneg %p219
        %p836 = pneg %p216
        %s837 = sand.u32 %s30, 1
        %s838 = scalar_lea.sflag [#allocation5], %s837
        %s839 = sand.u32 %s232, 1
        %s840 = scalar_lea.vmem [#allocation13], %s839
        %p841 = pneg %p245
        %p842 = pneg %p242
        %s843 = sand.u32 %s30, 1
        %s844 = scalar_lea.sflag [#allocation5], %s843
        %s845 = sand.u32 %s258, 1
        %s846 = smul.addr %s845, 128
        %s847 = scalar_lea.vmem [#allocation14], %s846
        %p848 = pneg %p271
        %p849 = pneg %p268
        %p850 = scmp.lt.s32.totalorder %s35, 1
        %s851 = scalar_select %p850, %s35, 1
        %s852 = smul.addr %s851, 2
        %s853 = scalar_lea.vmem %s9, %s852
        %p854 = pneg %p297
        %p855 = pneg %p294
        %s856 = sand.u32 %s30, 1
        %s857 = scalar_lea.sflag [#allocation5], %s856
        %s858 = sand.u32 %s310, 1
        %s859 = smul.addr %s858, 128
        %s860 = scalar_lea.vmem [#allocation15], %s859
        %p861 = pneg %p323
        %p862 = pneg %p320
        %p863 = scmp.lt.s32.totalorder %s35, 1
        %s864 = scalar_select %p863, %s35, 1
        %s865 = scalar_lea.vmem %s11, %s864
        %p866 = pneg %p349
        %p867 = pneg %p346
        %p868 = scmp.lt.s32.totalorder %s35, 1
        %s869 = scalar_select %p868, %s35, 1
        %s870 = scalar_lea.vmem %s12, %s869
        %p871 = pneg %p375
        %p872 = pneg %p372
        %p873 = scmp.lt.s32.totalorder %s35, 1
        %s874 = scalar_select %p873, %s35, 1
        %s875 = scalar_lea.vmem %s13, %s874
        %p876 = pneg %p401
        %p877 = pneg %p398
        %p878 = pneg %p422
        %p879 = pneg %p419
        %p880 = pneg %p443
        %p881 = pneg %p440
        %p882 = pneg %p469
        %p883 = pneg %p466
        %s884 = smul.u32 2, %s34
        %s885 = smul.u32 2, %s34
        %p886 = scmp.lt.s32.totalorder %s35, 1
        %s887 = scalar_select %p886, %s35, 1
        %s888 = scalar_lea.vmem %s5, %s887
        %p889 = scmp.lt.s32.totalorder %s35, 1
        %s890 = scalar_select %p889, %s35, 1
        %s891 = smul.addr %s890, 2
        %s892 = scalar_lea.vmem %s9, %s891
        %p893 = scmp.lt.s32.totalorder %s35, 1
        %s894 = scalar_select %p893, %s35, 1
        %s895 = scalar_lea.vmem %s11, %s894
        %p896 = scmp.lt.s32.totalorder %s35, 1
        %s897 = scalar_select %p896, %s35, 1
        %s898 = scalar_lea.vmem %s12, %s897
        %p899 = scmp.lt.s32.totalorder %s35, 1
        %s900 = scalar_select %p899, %s35, 1
        %s901 = scalar_lea.vmem %s13, %s900
        %s902 = smul.u32 2, %s34
        %p904 = scmp.eq.s32.totalorder %s35, 0
        // Predicated region
        $region125: #{tpu_custom_call.1} parent=83 // pred_check
          %p905 = pneg %p904
        $region126: #{tpu_custom_call.1} parent=83 // pred_check_branch
          %907 = sbr.rel (%p905) target = $region128
        $region127: #{tpu_custom_call.1} parent=83 // pred_region
          %v908 = vld [vmem:[#allocation4] sm:$0xff]
          %v909 = vld [vmem:[#allocation4 + $0x8] sm:$0xff]
          %v910 = vld [vmem:[#allocation7] sm:$0xff]
          %v911 = vld [vmem:[#allocation7 + $0x8] sm:$0xff]
          %v912 = vadd.f32 %v908, %v910
          %v913 = vadd.f32 %v909, %v911
          %914 = vst [vmem:[#allocation2] sm:$0xff] %v912
          %915 = vst [vmem:[#allocation2 + $0x8] sm:$0xff] %v913
        $region128: #{tpu_custom_call.1} parent=83 // pred_fallthru
          _
        %v916 = vld [vmem:[#allocation2] sm:$0xff]
        %v917 = vld [vmem:[#allocation2 + $0x8] sm:$0xff]
        %v918 = vpack.c.bf16 %v917, %v916
        %v919 = vld [vmem:[%s732] sm:$0xff]
        %v920 = vld [vmem:[%s732 + $0x8] sm:$0xf]
        %v921 = vld [vmem:[%s732 + $0xc] sm:$0xff]
        %v922 = vld [vmem:[%s732 + $0x14] sm:$0xf]
        %v923 = vld [vmem:[%s732 + $0x18] sm:$0xff]
        %v924 = vld [vmem:[%s732 + $0x20] sm:$0xf]
        %v925 = vld [vmem:[%s732 + $0x24] sm:$0xff]
        %v926 = vld [vmem:[%s732 + $0x2c] sm:$0xf]
        %v927 = vld [vmem:[%s732 + $0x30] sm:$0xff]
        %v928 = vld [vmem:[%s732 + $0x38] sm:$0xf]
        %v929 = vld [vmem:[%s732 + $0x3c] sm:$0xff]
        %v930 = vld [vmem:[%s732 + $0x44] sm:$0xf]
        %v931 = vld [vmem:[%s732 + $0x48] sm:$0xff]
        %v932 = vld [vmem:[%s732 + $0x50] sm:$0xf]
        %v933 = vld [vmem:[%s732 + $0x54] sm:$0xff]
        %v934 = vld [vmem:[%s732 + $0x5c] sm:$0xf]
        %v935 = vld [vmem:[%s732 + $0x60] sm:$0xff]
        %v936 = vld [vmem:[%s732 + $0x68] sm:$0xf]
        %v937 = vld [vmem:[%s732 + $0x6c] sm:$0xff]
        %v938 = vld [vmem:[%s732 + $0x74] sm:$0xf]
        %v939 = vld [vmem:[%s732 + $0x78] sm:$0xff]
        %v940 = vld [vmem:[%s732 + $0x80] sm:$0xf]
        %v941 = vld [vmem:[%s732 + $0x84] sm:$0xff]
        %v942 = vld [vmem:[%s732 + $0x8c] sm:$0xf]
        %v943 = vld [vmem:[%s732 + $0x90] sm:$0xff]
        %v944 = vld [vmem:[%s732 + $0x98] sm:$0xf]
        %v945 = vld [vmem:[%s732 + $0x9c] sm:$0xff]
        %v946 = vld [vmem:[%s732 + $0xa4] sm:$0xf]
        %v947 = vld [vmem:[%s732 + $0xa8] sm:$0xff]
        %v948 = vld [vmem:[%s732 + $0xb0] sm:$0xf]
        %v949 = vld [vmem:[%s732 + $0xb4] sm:$0xff]
        %v950 = vld [vmem:[%s732 + $0xbc] sm:$0xf]
        %v951 = vld [vmem:[%s742] sm:$0x7]
        %v953 = vperm.slane %v951, 0
        %v954 = vperm.slane %v951, 1
        %v955 = vperm.slane %v951, 2
        %v991 = vunpack.c.l.b16 %v919
        %v992 = vunpack.c.h.b16 %v919
        %v993 = vunpack.c.l.b16 %v920
        %v994 = vunpack.c.l.b16 %v921
        %v995 = vunpack.c.h.b16 %v921
        %v996 = vunpack.c.l.b16 %v922
        %v997 = vunpack.c.l.b16 %v923
        %v998 = vunpack.c.h.b16 %v923
        %v999 = vunpack.c.l.b16 %v924
        %v1000 = vunpack.c.l.b16 %v925
        %v1001 = vunpack.c.h.b16 %v925
        %v1002 = vunpack.c.l.b16 %v926
        %v1003 = vunpack.c.l.b16 %v927
        %v1004 = vunpack.c.h.b16 %v927
        %v1005 = vunpack.c.l.b16 %v928
        %v1006 = vunpack.c.l.b16 %v929
        %v1007 = vunpack.c.h.b16 %v929
        %v1008 = vunpack.c.l.b16 %v930
        %v1009 = vunpack.c.l.b16 %v931
        %v1010 = vunpack.c.h.b16 %v931
        %v1011 = vunpack.c.l.b16 %v932
        %v1012 = vunpack.c.l.b16 %v933
        %v1013 = vunpack.c.h.b16 %v933
        %v1014 = vunpack.c.l.b16 %v934
        %v1015 = vunpack.c.l.b16 %v935
        %v1016 = vunpack.c.h.b16 %v935
        %v1017 = vunpack.c.l.b16 %v936
        %v1018 = vunpack.c.l.b16 %v937
        %v1019 = vunpack.c.h.b16 %v937
        %v1020 = vunpack.c.l.b16 %v938
        %v1021 = vunpack.c.l.b16 %v939
        %v1022 = vunpack.c.h.b16 %v939
        %v1023 = vunpack.c.l.b16 %v940
        %v1024 = vunpack.c.l.b16 %v941
        %v1025 = vunpack.c.h.b16 %v941
        %v1026 = vunpack.c.l.b16 %v942
        %v1027 = vunpack.c.l.b16 %v943
        %v1028 = vunpack.c.h.b16 %v943
        %v1029 = vunpack.c.l.b16 %v944
        %v1030 = vunpack.c.l.b16 %v945
        %v1031 = vunpack.c.h.b16 %v945
        %v1032 = vunpack.c.l.b16 %v946
        %v1033 = vunpack.c.l.b16 %v947
        %v1034 = vunpack.c.h.b16 %v947
        %v1035 = vunpack.c.l.b16 %v948
        %v1036 = vunpack.c.l.b16 %v949
        %v1037 = vunpack.c.h.b16 %v949
        %v1038 = vunpack.c.l.b16 %v950
        %v1039 = vpack.c.b16 %v994, %v991
        %v1040 = vpack.c.b16 %v995, %v992
        %v1041 = vpack.c.b16 %v996, %v993
        %v1042 = vpack.c.b16 %v1000, %v997
        %v1043 = vpack.c.b16 %v1001, %v998
        %v1044 = vpack.c.b16 %v1002, %v999
        %v1045 = vpack.c.b16 %v1006, %v1003
        %v1046 = vpack.c.b16 %v1007, %v1004
        %v1047 = vpack.c.b16 %v1008, %v1005
        %v1048 = vpack.c.b16 %v1012, %v1009
        %v1049 = vpack.c.b16 %v1013, %v1010
        %v1050 = vpack.c.b16 %v1014, %v1011
        %v1051 = vpack.c.b16 %v1018, %v1015
        %v1052 = vpack.c.b16 %v1019, %v1016
        %v1053 = vpack.c.b16 %v1020, %v1017
        %v1054 = vpack.c.b16 %v1024, %v1021
        %v1055 = vpack.c.b16 %v1025, %v1022
        %v1056 = vpack.c.b16 %v1026, %v1023
        %v1057 = vpack.c.b16 %v1030, %v1027
        %v1058 = vpack.c.b16 %v1031, %v1028
        %v1059 = vpack.c.b16 %v1032, %v1029
        %v1060 = vpack.c.b16 %v1036, %v1033
        %v1061 = vpack.c.b16 %v1037, %v1034
        %v1062 = vpack.c.b16 %v1038, %v1035
        %1087 = vmatpush.bf16.msra.mxu0 %v1060
        %1088 = vmatpush.bf16.msra.mxu0 %v1057
        %1089 = vmatpush.bf16.msra.mxu0 %v1054
        %1090 = vmatpush.bf16.msra.mxu0 %v1051
        %1091 = vmatpush.bf16.msra.mxu0 %v1048
        %1092 = vmatpush.bf16.msra.mxu0 %v1045
        %1093 = vmatpush.bf16.msra.mxu0 %v1042
        %1094 = vmatpush.bf16.msra.mxu0 %v1039
        %1095 = vmatmul.bf16.gmra.mxu0 %v918
        %v1096 = vpop.f32.mrf.mxu0
        %v1097 = vadd.f32 %v953, %v1096
        %v1098 = vpop.f32.mrf.mxu0
        %v1099 = vadd.f32 %v953, %v1098
        %1100 = vdwg.mxu0
        %1101 = vmatpush.bf16.msra.mxu0 %v1061
        %1102 = vmatpush.bf16.msra.mxu0 %v1058
        %1103 = vmatpush.bf16.msra.mxu0 %v1055
        %1104 = vmatpush.bf16.msra.mxu0 %v1052
        %1105 = vmatpush.bf16.msra.mxu0 %v1049
        %1106 = vmatpush.bf16.msra.mxu0 %v1046
        %1107 = vmatpush.bf16.msra.mxu0 %v1043
        %1108 = vmatpush.bf16.msra.mxu0 %v1040
        %1109 = vmatmul.bf16.gmra.mxu0 %v918
        %v1110 = vpop.f32.mrf.mxu0
        %v1111 = vadd.f32 %v954, %v1110
        %v1112 = vpop.f32.mrf.mxu0
        %v1113 = vadd.f32 %v954, %v1112
        %1114 = vdwg.mxu0
        %1115 = vmatpush.bf16.msra.mxu0 %v1062
        %1116 = vmatpush.bf16.msra.mxu0 %v1059
        %1117 = vmatpush.bf16.msra.mxu0 %v1056
        %1118 = vmatpush.bf16.msra.mxu0 %v1053
        %1119 = vmatpush.bf16.msra.mxu0 %v1050
        %1120 = vmatpush.bf16.msra.mxu0 %v1047
        %1121 = vmatpush.bf16.msra.mxu0 %v1044
        %1122 = vmatpush.bf16.msra.mxu0 %v1041
        %1123 = vmatmul.bf16.gmra.mxu0 %v918
        %v1124 = vpop.f32.mrf.mxu0
        %v1125 = vadd.f32 %v955, %v1124
        %v1126 = vpop.f32.mrf.mxu0
        %v1127 = vadd.f32 %v955, %v1126
        %1128 = vdwg.mxu0
        %v1129 = vpack.c.bf16 %v1097, %v1097
        %v1130 = vpack.c.bf16 %v1099, %v1099
        %v1131 = vpack.c.bf16 %v1111, %v1111
        %v1132 = vpack.c.bf16 %v1113, %v1113
        %v1133 = vpack.c.bf16 %v1125, %v1125
        %v1134 = vpack.c.bf16 %v1127, %v1127
        %vm1135 = vcmask 261120
        %v1137 = vsel %vm1135, %v1129, 0
        %v1140 = vsel %vm1135, %v1131, 0
        %1142 = vmatpush.bf16.xpose.msra.mxu0 0
        %1143 = vmatpush.bf16.xpose.msra.mxu0 0
        %1144 = vmatpush.bf16.xpose.msra.mxu0 0
        %1145 = vmatpush.bf16.xpose.msra.mxu0 0
        %1146 = vmatpush.bf16.xpose.msra.mxu0 0
        %1147 = vmatpush.bf16.xpose.msra.mxu0 0
        %1148 = vmatpush.bf16.xpose.msra.mxu0 0
        %1149 = vmatpush.bf16.xpose.msra.mxu0 %v1140
        %1150 = vmatmul.bf16.gmra.mxu0 %v1137
        %v1151 = vpop.f32.mrf.mxu0
        %v1152 = vadd.f32 0.0, %v1151
        %v1153 = vpop.f32.mrf.mxu0
        %1154 = vdwg.mxu0
        %v1156 = vsel %vm1135, %v1130, 0
        %v1159 = vsel %vm1135, %v1132, 0
        %1161 = vmatpush.bf16.xpose.msra.mxu0 0
        %1162 = vmatpush.bf16.xpose.msra.mxu0 0
        %1163 = vmatpush.bf16.xpose.msra.mxu0 0
        %1164 = vmatpush.bf16.xpose.msra.mxu0 0
        %1165 = vmatpush.bf16.xpose.msra.mxu0 0
        %1166 = vmatpush.bf16.xpose.msra.mxu0 0
        %1167 = vmatpush.bf16.xpose.msra.mxu0 0
        %1168 = vmatpush.bf16.xpose.msra.mxu0 %v1159
        %1169 = vmatmul.bf16.gmra.mxu0 %v1156
        %v1170 = vpop.f32.mrf.mxu0
        %v1171 = vadd.f32 0.0, %v1170
        %v1172 = vpop.f32.mrf.mxu0
        %1173 = vdwg.mxu0
        %vm1174 = vcmask 64512
        %v1175 = vsel %vm1174, %v1152, -inf
        %1176 = vmax.xlane.f32.xlu0 %v1175
        %v1177 = vpop.xlane.xlu0 %1176
        %v1178 = vsel %vm1174, %v1171, -inf
        %1179 = vmax.xlane.f32.xlu0 %v1178
        %v1180 = vpop.xlane.xlu0 %1179
        %v1181 = vsub.f32 %v1152, %v1177
        %v1182 = vsub.f32 %v1171, %v1180
        %v1183 = vmul.f32 %v1181, 1.442695
        %v1184 = vpow.pop %v1183
        %v1185 = vmul.f32 %v1182, 1.442695
        %v1186 = vpow.pop %v1185
        %v1187 = vsel %vm1174, %v1184, 0.0
        %1188 = vadd.xlane.f32.xlu0 %v1187
        %v1189 = vpop.xlane.xlu0 %1188
        %v1190 = vsel %vm1174, %v1186, 0.0
        %1191 = vadd.xlane.f32.xlu0 %v1190
        %v1192 = vpop.xlane.xlu0 %1191
        %v1193 = vrcp.pop %v1189
        %v1194 = vrcp.pop %v1192
        %v1195 = vmul.f32 %v1184, %v1193
        %v1196 = vmul.f32 %v1186, %v1194
        %v1197 = vpack.c.bf16 %v1195, %v1195
        %v1198 = vpack.c.bf16 %v1196, %v1196
        %v1200 = vsel %vm1174, %v1197, 0
        %vm1202 = vcmask 1043456
        %v1204 = vsel %vm1202, %v1133, 0
        %1206 = vmatpush.bf16.msra.mxu0 0
        %1207 = vmatpush.bf16.msra.mxu0 0
        %1208 = vmatpush.bf16.msra.mxu0 0
        %1209 = vmatpush.bf16.msra.mxu0 0
        %1210 = vmatpush.bf16.msra.mxu0 0
        %1211 = vmatpush.bf16.msra.mxu0 0
        %1212 = vmatpush.bf16.msra.mxu0 0
        %1213 = vmatpush.bf16.msra.mxu0 %v1204
        %1214 = vmatmul.bf16.gmra.mxu0 %v1200
        %v1215 = vpop.f32.mrf.mxu0
        %v1216 = vadd.f32 0.0, %v1215
        %v1217 = vpop.f32.mrf.mxu0
        %1218 = vdwg.mxu0
        %v1220 = vsel %vm1174, %v1198, 0
        %v1223 = vsel %vm1202, %v1134, 0
        %1225 = vmatpush.bf16.msra.mxu0 0
        %1226 = vmatpush.bf16.msra.mxu0 0
        %1227 = vmatpush.bf16.msra.mxu0 0
        %1228 = vmatpush.bf16.msra.mxu0 0
        %1229 = vmatpush.bf16.msra.mxu0 0
        %1230 = vmatpush.bf16.msra.mxu0 0
        %1231 = vmatpush.bf16.msra.mxu0 0
        %1232 = vmatpush.bf16.msra.mxu0 %v1223
        %1233 = vmatmul.bf16.gmra.mxu0 %v1220
        %v1234 = vpop.f32.mrf.mxu0
        %v1235 = vadd.f32 0.0, %v1234
        %v1236 = vpop.f32.mrf.mxu0
        %1237 = vdwg.mxu0
        %1238 = vst.msk [vmem:[#allocation3] sm:$0xff] %vm1135, %v1216
        %1239 = vst.msk [vmem:[#allocation3 + $0x8] sm:$0xff] %vm1135, %v1235
        %v1241 = vunpack.c.l.b16 %v1129
        %v1242 = vpack.c.b16 %v1241, %v1241
        %1243 = vrot.lane.b32.xlu0 %v1242, 96
        %v1244 = vpop.permute.xlu0 %1243
        %v1246 = vunpack.c.l.b16 %v1131
        %v1247 = vpack.c.b16 %v1246, %v1246
        %1248 = vrot.lane.b32.xlu0 %v1247, 96
        %v1249 = vpop.permute.xlu0 %1248
        %v1251 = vsel %vm1135, %v1244, 0
        %v1254 = vsel %vm1135, %v1249, 0
        %1256 = vmatpush.bf16.xpose.msra.mxu0 0
        %1257 = vmatpush.bf16.xpose.msra.mxu0 0
        %1258 = vmatpush.bf16.xpose.msra.mxu0 0
        %1259 = vmatpush.bf16.xpose.msra.mxu0 0
        %1260 = vmatpush.bf16.xpose.msra.mxu0 0
        %1261 = vmatpush.bf16.xpose.msra.mxu0 0
        %1262 = vmatpush.bf16.xpose.msra.mxu0 0
        %1263 = vmatpush.bf16.xpose.msra.mxu0 %v1254
        %1264 = vmatmul.bf16.gmra.mxu0 %v1251
        %v1265 = vpop.f32.mrf.mxu0
        %v1266 = vadd.f32 0.0, %v1265
        %v1267 = vpop.f32.mrf.mxu0
        %1268 = vdwg.mxu0
        %v1270 = vunpack.c.l.b16 %v1130
        %v1271 = vpack.c.b16 %v1270, %v1270
        %1272 = vrot.lane.b32.xlu0 %v1271, 96
        %v1273 = vpop.permute.xlu0 %1272
        %v1275 = vunpack.c.l.b16 %v1132
        %v1276 = vpack.c.b16 %v1275, %v1275
        %1277 = vrot.lane.b32.xlu0 %v1276, 96
        %v1278 = vpop.permute.xlu0 %1277
        %v1280 = vsel %vm1135, %v1273, 0
        %v1283 = vsel %vm1135, %v1278, 0
        %1285 = vmatpush.bf16.xpose.msra.mxu0 0
        %1286 = vmatpush.bf16.xpose.msra.mxu0 0
        %1287 = vmatpush.bf16.xpose.msra.mxu0 0
        %1288 = vmatpush.bf16.xpose.msra.mxu0 0
        %1289 = vmatpush.bf16.xpose.msra.mxu0 0
        %1290 = vmatpush.bf16.xpose.msra.mxu0 0
        %1291 = vmatpush.bf16.xpose.msra.mxu0 0
        %1292 = vmatpush.bf16.xpose.msra.mxu0 %v1283
        %1293 = vmatmul.bf16.gmra.mxu0 %v1280
        %v1294 = vpop.f32.mrf.mxu0
        %v1295 = vadd.f32 0.0, %v1294
        %v1296 = vpop.f32.mrf.mxu0
        %1297 = vdwg.mxu0
        %v1298 = vsel %vm1174, %v1266, -inf
        %1299 = vmax.xlane.f32.xlu0 %v1298
        %v1300 = vpop.xlane.xlu0 %1299
        %v1301 = vsel %vm1174, %v1295, -inf
        %1302 = vmax.xlane.f32.xlu0 %v1301
        %v1303 = vpop.xlane.xlu0 %1302
        %v1304 = vsub.f32 %v1266, %v1300
        %v1305 = vsub.f32 %v1295, %v1303
        %v1306 = vmul.f32 %v1304, 1.442695
        %v1307 = vpow.pop %v1306
        %v1308 = vmul.f32 %v1305, 1.442695
        %v1309 = vpow.pop %v1308
        %v1310 = vsel %vm1174, %v1307, 0.0
        %1311 = vadd.xlane.f32.xlu0 %v1310
        %v1312 = vpop.xlane.xlu0 %1311
        %v1313 = vsel %vm1174, %v1309, 0.0
        %1314 = vadd.xlane.f32.xlu0 %v1313
        %v1315 = vpop.xlane.xlu0 %1314
        %v1316 = vrcp.pop %v1312
        %v1317 = vrcp.pop %v1315
        %v1318 = vmul.f32 %v1307, %v1316
        %v1319 = vmul.f32 %v1309, %v1317
        %v1320 = vpack.c.bf16 %v1318, %v1318
        %v1321 = vpack.c.bf16 %v1319, %v1319
        %v1323 = vunpack.c.l.b16 %v1133
        %v1324 = vpack.c.b16 %v1323, %v1323
        %1325 = vrot.lane.b32.xlu0 %v1324, 96
        %v1326 = vpop.permute.xlu0 %1325
        %v1328 = vsel %vm1174, %v1320, 0
        %v1331 = vsel %vm1202, %v1326, 0
        %1333 = vmatpush.bf16.msra.mxu0 0
        %1334 = vmatpush.bf16.msra.mxu0 0
        %1335 = vmatpush.bf16.msra.mxu0 0
        %1336 = vmatpush.bf16.msra.mxu0 0
        %1337 = vmatpush.bf16.msra.mxu0 0
        %1338 = vmatpush.bf16.msra.mxu0 0
        %1339 = vmatpush.bf16.msra.mxu0 0
        %1340 = vmatpush.bf16.msra.mxu0 %v1331
        %1341 = vmatmul.bf16.gmra.mxu0 %v1328
        %v1342 = vpop.f32.mrf.mxu0
        %v1343 = vadd.f32 0.0, %v1342
        %v1344 = vpop.f32.mrf.mxu0
        %1345 = vdwg.mxu0
        %v1347 = vunpack.c.l.b16 %v1134
        %v1348 = vpack.c.b16 %v1347, %v1347
        %1349 = vrot.lane.b32.xlu0 %v1348, 96
        %v1350 = vpop.permute.xlu0 %1349
        %v1352 = vsel %vm1174, %v1321, 0
        %v1355 = vsel %vm1202, %v1350, 0
        %1357 = vmatpush.bf16.msra.mxu0 0
        %1358 = vmatpush.bf16.msra.mxu0 0
        %1359 = vmatpush.bf16.msra.mxu0 0
        %1360 = vmatpush.bf16.msra.mxu0 0
        %1361 = vmatpush.bf16.msra.mxu0 0
        %1362 = vmatpush.bf16.msra.mxu0 0
        %1363 = vmatpush.bf16.msra.mxu0 0
        %1364 = vmatpush.bf16.msra.mxu0 %v1355
        %1365 = vmatmul.bf16.gmra.mxu0 %v1352
        %v1366 = vpop.f32.mrf.mxu0
        %v1367 = vadd.f32 0.0, %v1366
        %v1368 = vpop.f32.mrf.mxu0
        %1369 = vdwg.mxu0
        %1372 = vrot.lane.b32.xlu0 %v1343, 32
        %v1373 = vpop.permute.xlu0 %1372
        %1374 = vrot.lane.b32.xlu0 %v1367, 32
        %v1375 = vpop.permute.xlu0 %1374
        %vm1378 = vcmask 523520
        %1379 = vst.msk [vmem:[#allocation3] sm:$0xff] %vm1378, %v1373
        %1380 = vst.msk [vmem:[#allocation3 + $0x8] sm:$0xff] %vm1378, %v1375
        %1381 = vrot.lane.b32.xlu0 %v1242, 64
        %v1382 = vpop.permute.xlu0 %1381
        %1383 = vrot.lane.b32.xlu0 %v1247, 64
        %v1384 = vpop.permute.xlu0 %1383
        %v1386 = vsel %vm1135, %v1382, 0
        %v1389 = vsel %vm1135, %v1384, 0
        %1391 = vmatpush.bf16.xpose.msra.mxu0 0
        %1392 = vmatpush.bf16.xpose.msra.mxu0 0
        %1393 = vmatpush.bf16.xpose.msra.mxu0 0
        %1394 = vmatpush.bf16.xpose.msra.mxu0 0
        %1395 = vmatpush.bf16.xpose.msra.mxu0 0
        %1396 = vmatpush.bf16.xpose.msra.mxu0 0
        %1397 = vmatpush.bf16.xpose.msra.mxu0 0
        %1398 = vmatpush.bf16.xpose.msra.mxu0 %v1389
        %1399 = vmatmul.bf16.gmra.mxu0 %v1386
        %v1400 = vpop.f32.mrf.mxu0
        %v1401 = vadd.f32 0.0, %v1400
        %v1402 = vpop.f32.mrf.mxu0
        %1403 = vdwg.mxu0
        %1404 = vrot.lane.b32.xlu0 %v1271, 64
        %v1405 = vpop.permute.xlu0 %1404
        %1406 = vrot.lane.b32.xlu0 %v1276, 64
        %v1407 = vpop.permute.xlu0 %1406
        %v1409 = vsel %vm1135, %v1405, 0
        %v1412 = vsel %vm1135, %v1407, 0
        %1414 = vmatpush.bf16.xpose.msra.mxu0 0
        %1415 = vmatpush.bf16.xpose.msra.mxu0 0
        %1416 = vmatpush.bf16.xpose.msra.mxu0 0
        %1417 = vmatpush.bf16.xpose.msra.mxu0 0
        %1418 = vmatpush.bf16.xpose.msra.mxu0 0
        %1419 = vmatpush.bf16.xpose.msra.mxu0 0
        %1420 = vmatpush.bf16.xpose.msra.mxu0 0
        %1421 = vmatpush.bf16.xpose.msra.mxu0 %v1412
        %1422 = vmatmul.bf16.gmra.mxu0 %v1409
        %v1423 = vpop.f32.mrf.mxu0
        %v1424 = vadd.f32 0.0, %v1423
        %v1425 = vpop.f32.mrf.mxu0
        %1426 = vdwg.mxu0
        %v1427 = vsel %vm1174, %v1401, -inf
        %1428 = vmax.xlane.f32.xlu0 %v1427
        %v1429 = vpop.xlane.xlu0 %1428
        %v1430 = vsel %vm1174, %v1424, -inf
        %1431 = vmax.xlane.f32.xlu0 %v1430
        %v1432 = vpop.xlane.xlu0 %1431
        %v1433 = vsub.f32 %v1401, %v1429
        %v1434 = vsub.f32 %v1424, %v1432
        %v1435 = vmul.f32 %v1433, 1.442695
        %v1436 = vpow.pop %v1435
        %v1437 = vmul.f32 %v1434, 1.442695
        %v1438 = vpow.pop %v1437
        %v1439 = vsel %vm1174, %v1436, 0.0
        %1440 = vadd.xlane.f32.xlu0 %v1439
        %v1441 = vpop.xlane.xlu0 %1440
        %v1442 = vsel %vm1174, %v1438, 0.0
        %1443 = vadd.xlane.f32.xlu0 %v1442
        %v1444 = vpop.xlane.xlu0 %1443
        %v1445 = vrcp.pop %v1441
        %v1446 = vrcp.pop %v1444
        %v1447 = vmul.f32 %v1436, %v1445
        %v1448 = vmul.f32 %v1438, %v1446
        %v1449 = vpack.c.bf16 %v1447, %v1447
        %v1450 = vpack.c.bf16 %v1448, %v1448
        %1451 = vrot.lane.b32.xlu0 %v1324, 64
        %v1452 = vpop.permute.xlu0 %1451
        %v1454 = vsel %vm1174, %v1449, 0
        %v1457 = vsel %vm1202, %v1452, 0
        %1459 = vmatpush.bf16.msra.mxu0 0
        %1460 = vmatpush.bf16.msra.mxu0 0
        %1461 = vmatpush.bf16.msra.mxu0 0
        %1462 = vmatpush.bf16.msra.mxu0 0
        %1463 = vmatpush.bf16.msra.mxu0 0
        %1464 = vmatpush.bf16.msra.mxu0 0
        %1465 = vmatpush.bf16.msra.mxu0 0
        %1466 = vmatpush.bf16.msra.mxu0 %v1457
        %1467 = vmatmul.bf16.gmra.mxu0 %v1454
        %v1468 = vpop.f32.mrf.mxu0
        %v1469 = vadd.f32 0.0, %v1468
        %v1470 = vpop.f32.mrf.mxu0
        %1471 = vdwg.mxu0
        %1472 = vrot.lane.b32.xlu0 %v1348, 64
        %v1473 = vpop.permute.xlu0 %1472
        %v1475 = vsel %vm1174, %v1450, 0
        %v1478 = vsel %vm1202, %v1473, 0
        %1480 = vmatpush.bf16.msra.mxu0 0
        %1481 = vmatpush.bf16.msra.mxu0 0
        %1482 = vmatpush.bf16.msra.mxu0 0
        %1483 = vmatpush.bf16.msra.mxu0 0
        %1484 = vmatpush.bf16.msra.mxu0 0
        %1485 = vmatpush.bf16.msra.mxu0 0
        %1486 = vmatpush.bf16.msra.mxu0 0
        %1487 = vmatpush.bf16.msra.mxu0 %v1478
        %1488 = vmatmul.bf16.gmra.mxu0 %v1475
        %v1489 = vpop.f32.mrf.mxu0
        %v1490 = vadd.f32 0.0, %v1489
        %v1491 = vpop.f32.mrf.mxu0
        %1492 = vdwg.mxu0
        %1495 = vrot.lane.b32.xlu0 %v1469, 64
        %v1496 = vpop.permute.xlu0 %1495
        %1497 = vrot.lane.b32.xlu0 %v1490, 64
        %v1498 = vpop.permute.xlu0 %1497
        %vm1501 = vcmask 785920
        %1502 = vst.msk [vmem:[#allocation3] sm:$0xff] %vm1501, %v1496
        %1503 = vst.msk [vmem:[#allocation3 + $0x8] sm:$0xff] %vm1501, %v1498
        %1504 = vrot.lane.b32.xlu0 %v1242, 32
        %v1505 = vpop.permute.xlu0 %1504
        %1506 = vrot.lane.b32.xlu0 %v1247, 32
        %v1507 = vpop.permute.xlu0 %1506
        %v1509 = vsel %vm1135, %v1505, 0
        %v1512 = vsel %vm1135, %v1507, 0
        %1514 = vmatpush.bf16.xpose.msra.mxu0 0
        %1515 = vmatpush.bf16.xpose.msra.mxu0 0
        %1516 = vmatpush.bf16.xpose.msra.mxu0 0
        %1517 = vmatpush.bf16.xpose.msra.mxu0 0
        %1518 = vmatpush.bf16.xpose.msra.mxu0 0
        %1519 = vmatpush.bf16.xpose.msra.mxu0 0
        %1520 = vmatpush.bf16.xpose.msra.mxu0 0
        %1521 = vmatpush.bf16.xpose.msra.mxu0 %v1512
        %1522 = vmatmul.bf16.gmra.mxu0 %v1509
        %v1523 = vpop.f32.mrf.mxu0
        %v1524 = vadd.f32 0.0, %v1523
        %v1525 = vpop.f32.mrf.mxu0
        %1526 = vdwg.mxu0
        %1527 = vrot.lane.b32.xlu0 %v1271, 32
        %v1528 = vpop.permute.xlu0 %1527
        %1529 = vrot.lane.b32.xlu0 %v1276, 32
        %v1530 = vpop.permute.xlu0 %1529
        %v1532 = vsel %vm1135, %v1528, 0
        %v1535 = vsel %vm1135, %v1530, 0
        %1537 = vmatpush.bf16.xpose.msra.mxu0 0
        %1538 = vmatpush.bf16.xpose.msra.mxu0 0
        %1539 = vmatpush.bf16.xpose.msra.mxu0 0
        %1540 = vmatpush.bf16.xpose.msra.mxu0 0
        %1541 = vmatpush.bf16.xpose.msra.mxu0 0
        %1542 = vmatpush.bf16.xpose.msra.mxu0 0
        %1543 = vmatpush.bf16.xpose.msra.mxu0 0
        %1544 = vmatpush.bf16.xpose.msra.mxu0 %v1535
        %1545 = vmatmul.bf16.gmra.mxu0 %v1532
        %v1546 = vpop.f32.mrf.mxu0
        %v1547 = vadd.f32 0.0, %v1546
        %v1548 = vpop.f32.mrf.mxu0
        %1549 = vdwg.mxu0
        %v1550 = vsel %vm1174, %v1524, -inf
        %1551 = vmax.xlane.f32.xlu0 %v1550
        %v1552 = vpop.xlane.xlu0 %1551
        %v1553 = vsel %vm1174, %v1547, -inf
        %1554 = vmax.xlane.f32.xlu0 %v1553
        %v1555 = vpop.xlane.xlu0 %1554
        %v1556 = vsub.f32 %v1524, %v1552
        %v1557 = vsub.f32 %v1547, %v1555
        %v1558 = vmul.f32 %v1556, 1.442695
        %v1559 = vpow.pop %v1558
        %v1560 = vmul.f32 %v1557, 1.442695
        %v1561 = vpow.pop %v1560
        %v1562 = vsel %vm1174, %v1559, 0.0
        %1563 = vadd.xlane.f32.xlu0 %v1562
        %v1564 = vpop.xlane.xlu0 %1563
        %v1565 = vsel %vm1174, %v1561, 0.0
        %1566 = vadd.xlane.f32.xlu0 %v1565
        %v1567 = vpop.xlane.xlu0 %1566
        %v1568 = vrcp.pop %v1564
        %v1569 = vrcp.pop %v1567
        %v1570 = vmul.f32 %v1559, %v1568
        %v1571 = vmul.f32 %v1561, %v1569
        %v1572 = vpack.c.bf16 %v1570, %v1570
        %v1573 = vpack.c.bf16 %v1571, %v1571
        %1574 = vrot.lane.b32.xlu0 %v1324, 32
        %v1575 = vpop.permute.xlu0 %1574
        %v1577 = vsel %vm1174, %v1572, 0
        %v1580 = vsel %vm1202, %v1575, 0
        %1582 = vmatpush.bf16.msra.mxu0 0
        %1583 = vmatpush.bf16.msra.mxu0 0
        %1584 = vmatpush.bf16.msra.mxu0 0
        %1585 = vmatpush.bf16.msra.mxu0 0
        %1586 = vmatpush.bf16.msra.mxu0 0
        %1587 = vmatpush.bf16.msra.mxu0 0
        %1588 = vmatpush.bf16.msra.mxu0 0
        %1589 = vmatpush.bf16.msra.mxu0 %v1580
        %1590 = vmatmul.bf16.gmra.mxu0 %v1577
        %v1591 = vpop.f32.mrf.mxu0
        %v1592 = vadd.f32 0.0, %v1591
        %v1593 = vpop.f32.mrf.mxu0
        %1594 = vdwg.mxu0
        %1595 = vrot.lane.b32.xlu0 %v1348, 32
        %v1596 = vpop.permute.xlu0 %1595
        %v1598 = vsel %vm1174, %v1573, 0
        %v1601 = vsel %vm1202, %v1596, 0
        %1603 = vmatpush.bf16.msra.mxu0 0
        %1604 = vmatpush.bf16.msra.mxu0 0
        %1605 = vmatpush.bf16.msra.mxu0 0
        %1606 = vmatpush.bf16.msra.mxu0 0
        %1607 = vmatpush.bf16.msra.mxu0 0
        %1608 = vmatpush.bf16.msra.mxu0 0
        %1609 = vmatpush.bf16.msra.mxu0 0
        %1610 = vmatpush.bf16.msra.mxu0 %v1601
        %1611 = vmatmul.bf16.gmra.mxu0 %v1598
        %v1612 = vpop.f32.mrf.mxu0
        %v1613 = vadd.f32 0.0, %v1612
        %v1614 = vpop.f32.mrf.mxu0
        %1615 = vdwg.mxu0
        %1618 = vrot.lane.b32.xlu0 %v1592, 96
        %v1619 = vpop.permute.xlu0 %1618
        %1620 = vrot.lane.b32.xlu0 %v1613, 96
        %v1621 = vpop.permute.xlu0 %1620
        %vm1624 = vcmask 1048320
        %1625 = vst.msk [vmem:[#allocation3] sm:$0xff] %vm1624, %v1619
        %1626 = vst.msk [vmem:[#allocation3 + $0x8] sm:$0xff] %vm1624, %v1621
        %v1627 = vld [vmem:[#allocation3] sm:$0xff]
        %v1628 = vld [vmem:[#allocation3 + $0x8] sm:$0xff]
        %v1629 = vpack.c.bf16 %v1628, %v1627
        %v1630 = vld [vmem:[%s752] sm:$0xf]
        %v1631 = vld [vmem:[%s752 + $0x4] sm:$0xf]
        %v1632 = vld [vmem:[%s752 + $0x8] sm:$0xf]
        %v1633 = vld [vmem:[%s752 + $0xc] sm:$0xf]
        %v1634 = vld [vmem:[%s752 + $0x10] sm:$0xf]
        %v1635 = vld [vmem:[%s752 + $0x14] sm:$0xf]
        %v1636 = vld [vmem:[%s752 + $0x18] sm:$0xf]
        %v1637 = vld [vmem:[%s752 + $0x1c] sm:$0xf]
        %v1638 = vld [vmem:[%s752 + $0x20] sm:$0xf]
        %v1639 = vld [vmem:[%s752 + $0x24] sm:$0xf]
        %v1640 = vld [vmem:[%s752 + $0x28] sm:$0xf]
        %v1641 = vld [vmem:[%s752 + $0x2c] sm:$0xf]
        %v1642 = vld [vmem:[%s752 + $0x30] sm:$0xf]
        %v1643 = vld [vmem:[%s752 + $0x34] sm:$0xf]
        %v1644 = vld [vmem:[%s752 + $0x38] sm:$0xf]
        %v1645 = vld [vmem:[%s752 + $0x3c] sm:$0xf]
        %v1646 = vld [vmem:[%s888] sm:$0x1]
        %v1648 = vperm.slane %v1646, 0
        %v1666 = vunpack.c.l.b16 %v1630
        %v1667 = vunpack.c.l.b16 %v1631
        %v1668 = vunpack.c.l.b16 %v1632
        %v1669 = vunpack.c.l.b16 %v1633
        %v1670 = vunpack.c.l.b16 %v1634
        %v1671 = vunpack.c.l.b16 %v1635
        %v1672 = vunpack.c.l.b16 %v1636
        %v1673 = vunpack.c.l.b16 %v1637
        %v1674 = vunpack.c.l.b16 %v1638
        %v1675 = vunpack.c.l.b16 %v1639
        %v1676 = vunpack.c.l.b16 %v1640
        %v1677 = vunpack.c.l.b16 %v1641
        %v1678 = vunpack.c.l.b16 %v1642
        %v1679 = vunpack.c.l.b16 %v1643
        %v1680 = vunpack.c.l.b16 %v1644
        %v1681 = vunpack.c.l.b16 %v1645
        %v1682 = vpack.c.b16 %v1667, %v1666
        %v1683 = vpack.c.b16 %v1669, %v1668
        %v1684 = vpack.c.b16 %v1671, %v1670
        %v1685 = vpack.c.b16 %v1673, %v1672
        %v1686 = vpack.c.b16 %v1675, %v1674
        %v1687 = vpack.c.b16 %v1677, %v1676
        %v1688 = vpack.c.b16 %v1679, %v1678
        %v1689 = vpack.c.b16 %v1681, %v1680
        %1698 = vmatpush.bf16.msra.mxu0 %v1689
        %1699 = vmatpush.bf16.msra.mxu0 %v1688
        %1700 = vmatpush.bf16.msra.mxu0 %v1687
        %1701 = vmatpush.bf16.msra.mxu0 %v1686
        %1702 = vmatpush.bf16.msra.mxu0 %v1685
        %1703 = vmatpush.bf16.msra.mxu0 %v1684
        %1704 = vmatpush.bf16.msra.mxu0 %v1683
        %1705 = vmatpush.bf16.msra.mxu0 %v1682
        %1706 = vmatmul.bf16.gmra.mxu0 %v1629
        %v1707 = vpop.f32.mrf.mxu0
        %v1708 = vadd.f32 %v1648, %v1707
        %v1709 = vpop.f32.mrf.mxu0
        %v1710 = vadd.f32 %v1648, %v1709
        %1711 = vdwg.mxu0
        %v1712 = vadd.f32 %v916, %v1708
        %v1713 = vadd.f32 %v917, %v1710
        %v1714 = vld [vmem:[%s761] sm:$0x1]
        %v1715 = vld [vmem:[%s770] sm:$0x1]
        %1716 = vadd.xlane.f32.xlu0 %v1712
        %v1717 = vpop.xlane.xlu0 %1716
        %1718 = vadd.xlane.f32.xlu0 %v1713
        %v1719 = vpop.xlane.xlu0 %1718
        %v1720 = vrcp.pop 128.0
        %v1721 = vmul.f32 128.0, %v1720
        %v1722 = vsub.f32 1.0, %v1721
        %v1723 = vmul.f32 %v1720, %v1722
        %v1724 = vadd.f32 %v1720, %v1723
        %vm1725 = vweird.f32 %v1720
        %v1726 = vsel %vm1725, %v1720, %v1724
        %v1727 = vmul.f32 %v1717, %v1726
        %v1728 = vmul.f32 %v1719, %v1726
        %v1729 = vsub.f32 %v1712, %v1727
        %v1730 = vsub.f32 %v1713, %v1728
        %v1731 = vmul.f32 %v1729, %v1729
        %v1732 = vmul.f32 %v1730, %v1730
        %1733 = vadd.xlane.f32.xlu0 %v1731
        %v1734 = vpop.xlane.xlu0 %1733
        %1735 = vadd.xlane.f32.xlu0 %v1732
        %v1736 = vpop.xlane.xlu0 %1735
        %v1737 = vmul.f32 %v1734, %v1726
        %v1738 = vmul.f32 %v1736, %v1726
        %v1739 = vadd.f32 %v1737, 1e-05
        %v1740 = vadd.f32 %v1738, 1e-05
        %v1741 = vrsqrt.pop %v1739
        %v1742 = vmul.f32 %v1741, %v1739
        %v1743 = vmul.f32 %v1742, %v1741
        %v1744 = vmul.f32 0.5, %v1743
        %v1745 = vsub.f32 1.5, %v1744
        %v1746 = vmul.f32 %v1741, %v1745
        %vm1747 = vweird.f32 %v1739
        %vm1748 = vweird.f32 %v1741
        %vm1749 = vmor %vm1747, %vm1748
        %v1750 = vsel %vm1749, %v1741, %v1746
        %v1751 = vrsqrt.pop %v1740
        %v1752 = vmul.f32 %v1751, %v1740
        %v1753 = vmul.f32 %v1752, %v1751
        %v1754 = vmul.f32 0.5, %v1753
        %v1755 = vsub.f32 1.5, %v1754
        %v1756 = vmul.f32 %v1751, %v1755
        %vm1757 = vweird.f32 %v1740
        %vm1758 = vweird.f32 %v1751
        %vm1759 = vmor %vm1757, %vm1758
        %v1760 = vsel %vm1759, %v1751, %v1756
        %v1761 = vmul.f32 %v1729, %v1750
        %v1762 = vmul.f32 %v1730, %v1760
        %v1764 = vperm.slane %v1714, 0
        %v1766 = vmul.f32 %v1761, %v1764
        %v1767 = vmul.f32 %v1762, %v1764
        %v1769 = vperm.slane %v1715, 0
        %v1771 = vadd.f32 %v1766, %v1769
        %v1772 = vadd.f32 %v1767, %v1769
        %v1773 = vpack.c.bf16 %v1772, %v1771
        %v1774 = vld [vmem:[%s780] sm:$0xff]
        %v1775 = vld [vmem:[%s780 + $0x8] sm:$0xff]
        %v1776 = vld [vmem:[%s780 + $0x10] sm:$0xff]
        %v1777 = vld [vmem:[%s780 + $0x18] sm:$0xff]
        %v1778 = vld [vmem:[%s780 + $0x20] sm:$0xff]
        %v1779 = vld [vmem:[%s780 + $0x28] sm:$0xff]
        %v1780 = vld [vmem:[%s780 + $0x30] sm:$0xff]
        %v1781 = vld [vmem:[%s780 + $0x38] sm:$0xff]
        %v1782 = vld [vmem:[%s780 + $0x40] sm:$0xff]
        %v1783 = vld [vmem:[%s780 + $0x48] sm:$0xff]
        %v1784 = vld [vmem:[%s780 + $0x50] sm:$0xff]
        %v1785 = vld [vmem:[%s780 + $0x58] sm:$0xff]
        %v1786 = vld [vmem:[%s780 + $0x60] sm:$0xff]
        %v1787 = vld [vmem:[%s780 + $0x68] sm:$0xff]
        %v1788 = vld [vmem:[%s780 + $0x70] sm:$0xff]
        %v1789 = vld [vmem:[%s780 + $0x78] sm:$0xff]
        %v1790 = vld [vmem:[%s892] sm:$0x3]
        %v1792 = vperm.slane %v1790, 0
        %v1793 = vperm.slane %v1790, 1
        %v1812 = vunpack.c.l.b16 %v1774
        %v1813 = vunpack.c.h.b16 %v1774
        %v1814 = vunpack.c.l.b16 %v1775
        %v1815 = vunpack.c.h.b16 %v1775
        %v1816 = vunpack.c.l.b16 %v1776
        %v1817 = vunpack.c.h.b16 %v1776
        %v1818 = vunpack.c.l.b16 %v1777
        %v1819 = vunpack.c.h.b16 %v1777
        %v1820 = vunpack.c.l.b16 %v1778
        %v1821 = vunpack.c.h.b16 %v1778
        %v1822 = vunpack.c.l.b16 %v1779
        %v1823 = vunpack.c.h.b16 %v1779
        %v1824 = vunpack.c.l.b16 %v1780
        %v1825 = vunpack.c.h.b16 %v1780
        %v1826 = vunpack.c.l.b16 %v1781
        %v1827 = vunpack.c.h.b16 %v1781
        %v1828 = vunpack.c.l.b16 %v1782
        %v1829 = vunpack.c.h.b16 %v1782
        %v1830 = vunpack.c.l.b16 %v1783
        %v1831 = vunpack.c.h.b16 %v1783
        %v1832 = vunpack.c.l.b16 %v1784
        %v1833 = vunpack.c.h.b16 %v1784
        %v1834 = vunpack.c.l.b16 %v1785
        %v1835 = vunpack.c.h.b16 %v1785
        %v1836 = vunpack.c.l.b16 %v1786
        %v1837 = vunpack.c.h.b16 %v1786
        %v1838 = vunpack.c.l.b16 %v1787
        %v1839 = vunpack.c.h.b16 %v1787
        %v1840 = vunpack.c.l.b16 %v1788
        %v1841 = vunpack.c.h.b16 %v1788
        %v1842 = vunpack.c.l.b16 %v1789
        %v1843 = vunpack.c.h.b16 %v1789
        %v1844 = vpack.c.b16 %v1814, %v1812
        %v1845 = vpack.c.b16 %v1815, %v1813
        %v1846 = vpack.c.b16 %v1818, %v1816
        %v1847 = vpack.c.b16 %v1819, %v1817
        %v1848 = vpack.c.b16 %v1822, %v1820
        %v1849 = vpack.c.b16 %v1823, %v1821
        %v1850 = vpack.c.b16 %v1826, %v1824
        %v1851 = vpack.c.b16 %v1827, %v1825
        %v1852 = vpack.c.b16 %v1830, %v1828
        %v1853 = vpack.c.b16 %v1831, %v1829
        %v1854 = vpack.c.b16 %v1834, %v1832
        %v1855 = vpack.c.b16 %v1835, %v1833
        %v1856 = vpack.c.b16 %v1838, %v1836
        %v1857 = vpack.c.b16 %v1839, %v1837
        %v1858 = vpack.c.b16 %v1842, %v1840
        %v1859 = vpack.c.b16 %v1843, %v1841
        %1876 = vmatpush.bf16.msra.mxu0 %v1858
        %1877 = vmatpush.bf16.msra.mxu0 %v1856
        %1878 = vmatpush.bf16.msra.mxu0 %v1854
        %1879 = vmatpush.bf16.msra.mxu0 %v1852
        %1880 = vmatpush.bf16.msra.mxu0 %v1850
        %1881 = vmatpush.bf16.msra.mxu0 %v1848
        %1882 = vmatpush.bf16.msra.mxu0 %v1846
        %1883 = vmatpush.bf16.msra.mxu0 %v1844
        %1884 = vmatmul.bf16.gmra.mxu0 %v1773
        %v1885 = vpop.f32.mrf.mxu0
        %v1886 = vadd.f32 %v1792, %v1885
        %v1887 = vpop.f32.mrf.mxu0
        %v1888 = vadd.f32 %v1792, %v1887
        %1889 = vdwg.mxu0
        %1890 = vmatpush.bf16.msra.mxu0 %v1859
        %1891 = vmatpush.bf16.msra.mxu0 %v1857
        %1892 = vmatpush.bf16.msra.mxu0 %v1855
        %1893 = vmatpush.bf16.msra.mxu0 %v1853
        %1894 = vmatpush.bf16.msra.mxu0 %v1851
        %1895 = vmatpush.bf16.msra.mxu0 %v1849
        %1896 = vmatpush.bf16.msra.mxu0 %v1847
        %1897 = vmatpush.bf16.msra.mxu0 %v1845
        %1898 = vmatmul.bf16.gmra.mxu0 %v1773
        %v1899 = vpop.f32.mrf.mxu0
        %v1900 = vadd.f32 %v1793, %v1899
        %v1901 = vpop.f32.mrf.mxu0
        %v1902 = vadd.f32 %v1793, %v1901
        %1903 = vdwg.mxu0
        %v1904 = vmax.f32 %v1886, 0.0
        %v1905 = vmax.f32 %v1900, 0.0
        %v1906 = vmax.f32 %v1888, 0.0
        %v1907 = vmax.f32 %v1902, 0.0
        %v1908 = vpack.c.bf16 %v1906, %v1904
        %v1909 = vpack.c.bf16 %v1907, %v1905
        %v1910 = vld [vmem:[%s790] sm:$0xf]
        %v1911 = vld [vmem:[%s790 + $0x4] sm:$0xf]
        %v1912 = vld [vmem:[%s790 + $0x8] sm:$0xf]
        %v1913 = vld [vmem:[%s790 + $0xc] sm:$0xf]
        %v1914 = vld [vmem:[%s790 + $0x10] sm:$0xf]
        %v1915 = vld [vmem:[%s790 + $0x14] sm:$0xf]
        %v1916 = vld [vmem:[%s790 + $0x18] sm:$0xf]
        %v1917 = vld [vmem:[%s790 + $0x1c] sm:$0xf]
        %v1918 = vld [vmem:[%s790 + $0x20] sm:$0xf]
        %v1919 = vld [vmem:[%s790 + $0x24] sm:$0xf]
        %v1920 = vld [vmem:[%s790 + $0x28] sm:$0xf]
        %v1921 = vld [vmem:[%s790 + $0x2c] sm:$0xf]
        %v1922 = vld [vmem:[%s790 + $0x30] sm:$0xf]
        %v1923 = vld [vmem:[%s790 + $0x34] sm:$0xf]
        %v1924 = vld [vmem:[%s790 + $0x38] sm:$0xf]
        %v1925 = vld [vmem:[%s790 + $0x3c] sm:$0xf]
        %v1926 = vld [vmem:[%s790 + $0x40] sm:$0xf]
        %v1927 = vld [vmem:[%s790 + $0x44] sm:$0xf]
        %v1928 = vld [vmem:[%s790 + $0x48] sm:$0xf]
        %v1929 = vld [vmem:[%s790 + $0x4c] sm:$0xf]
        %v1930 = vld [vmem:[%s790 + $0x50] sm:$0xf]
        %v1931 = vld [vmem:[%s790 + $0x54] sm:$0xf]
        %v1932 = vld [vmem:[%s790 + $0x58] sm:$0xf]
        %v1933 = vld [vmem:[%s790 + $0x5c] sm:$0xf]
        %v1934 = vld [vmem:[%s790 + $0x60] sm:$0xf]
        %v1935 = vld [vmem:[%s790 + $0x64] sm:$0xf]
        %v1936 = vld [vmem:[%s790 + $0x68] sm:$0xf]
        %v1937 = vld [vmem:[%s790 + $0x6c] sm:$0xf]
        %v1938 = vld [vmem:[%s790 + $0x70] sm:$0xf]
        %v1939 = vld [vmem:[%s790 + $0x74] sm:$0xf]
        %v1940 = vld [vmem:[%s790 + $0x78] sm:$0xf]
        %v1941 = vld [vmem:[%s790 + $0x7c] sm:$0xf]
        %v1942 = vld [vmem:[%s895] sm:$0x1]
        %v1944 = vperm.slane %v1942, 0
        %v1978 = vunpack.c.l.b16 %v1910
        %v1979 = vunpack.c.l.b16 %v1911
        %v1980 = vunpack.c.l.b16 %v1912
        %v1981 = vunpack.c.l.b16 %v1913
        %v1982 = vunpack.c.l.b16 %v1914
        %v1983 = vunpack.c.l.b16 %v1915
        %v1984 = vunpack.c.l.b16 %v1916
        %v1985 = vunpack.c.l.b16 %v1917
        %v1986 = vunpack.c.l.b16 %v1918
        %v1987 = vunpack.c.l.b16 %v1919
        %v1988 = vunpack.c.l.b16 %v1920
        %v1989 = vunpack.c.l.b16 %v1921
        %v1990 = vunpack.c.l.b16 %v1922
        %v1991 = vunpack.c.l.b16 %v1923
        %v1992 = vunpack.c.l.b16 %v1924
        %v1993 = vunpack.c.l.b16 %v1925
        %v1994 = vunpack.c.l.b16 %v1926
        %v1995 = vunpack.c.l.b16 %v1927
        %v1996 = vunpack.c.l.b16 %v1928
        %v1997 = vunpack.c.l.b16 %v1929
        %v1998 = vunpack.c.l.b16 %v1930
        %v1999 = vunpack.c.l.b16 %v1931
        %v2000 = vunpack.c.l.b16 %v1932
        %v2001 = vunpack.c.l.b16 %v1933
        %v2002 = vunpack.c.l.b16 %v1934
        %v2003 = vunpack.c.l.b16 %v1935
        %v2004 = vunpack.c.l.b16 %v1936
        %v2005 = vunpack.c.l.b16 %v1937
        %v2006 = vunpack.c.l.b16 %v1938
        %v2007 = vunpack.c.l.b16 %v1939
        %v2008 = vunpack.c.l.b16 %v1940
        %v2009 = vunpack.c.l.b16 %v1941
        %v2010 = vpack.c.b16 %v1979, %v1978
        %v2011 = vpack.c.b16 %v1981, %v1980
        %v2012 = vpack.c.b16 %v1983, %v1982
        %v2013 = vpack.c.b16 %v1985, %v1984
        %v2014 = vpack.c.b16 %v1987, %v1986
        %v2015 = vpack.c.b16 %v1989, %v1988
        %v2016 = vpack.c.b16 %v1991, %v1990
        %v2017 = vpack.c.b16 %v1993, %v1992
        %v2018 = vpack.c.b16 %v1995, %v1994
        %v2019 = vpack.c.b16 %v1997, %v1996
        %v2020 = vpack.c.b16 %v1999, %v1998
        %v2021 = vpack.c.b16 %v2001, %v2000
        %v2022 = vpack.c.b16 %v2003, %v2002
        %v2023 = vpack.c.b16 %v2005, %v2004
        %v2024 = vpack.c.b16 %v2007, %v2006
        %v2025 = vpack.c.b16 %v2009, %v2008
        %2042 = vmatpush.bf16.msra.mxu0 %v2017
        %2043 = vmatpush.bf16.msra.mxu0 %v2016
        %2044 = vmatpush.bf16.msra.mxu0 %v2015
        %2045 = vmatpush.bf16.msra.mxu0 %v2014
        %2046 = vmatpush.bf16.msra.mxu0 %v2013
        %2047 = vmatpush.bf16.msra.mxu0 %v2012
        %2048 = vmatpush.bf16.msra.mxu0 %v2011
        %2049 = vmatpush.bf16.msra.mxu0 %v2010
        %2050 = vmatmul.bf16.gmra.mxu0 %v1908
        %v2051 = vpop.f32.mrf.mxu0
        %v2052 = vadd.f32 %v1944, %v2051
        %v2053 = vpop.f32.mrf.mxu0
        %v2054 = vadd.f32 %v1944, %v2053
        %2055 = vdwg.mxu0
        %2056 = vmatpush.bf16.msra.mxu0 %v2025
        %2057 = vmatpush.bf16.msra.mxu0 %v2024
        %2058 = vmatpush.bf16.msra.mxu0 %v2023
        %2059 = vmatpush.bf16.msra.mxu0 %v2022
        %2060 = vmatpush.bf16.msra.mxu0 %v2021
        %2061 = vmatpush.bf16.msra.mxu0 %v2020
        %2062 = vmatpush.bf16.msra.mxu0 %v2019
        %2063 = vmatpush.bf16.msra.mxu0 %v2018
        %2064 = vmatmul.bf16.gmra.mxu0 %v1909
        %v2065 = vpop.f32.mrf.mxu0
        %v2066 = vadd.f32 %v2052, %v2065
        %v2067 = vpop.f32.mrf.mxu0
        %v2068 = vadd.f32 %v2054, %v2067
        %2069 = vdwg.mxu0
        %v2070 = vadd.f32 %v1771, %v2066
        %v2071 = vadd.f32 %v1772, %v2068
        %v2072 = vld [vmem:[%s898] sm:$0x1]
        %v2073 = vld [vmem:[%s901] sm:$0x1]
        %2074 = vadd.xlane.f32.xlu0 %v2070
        %v2075 = vpop.xlane.xlu0 %2074
        %2076 = vadd.xlane.f32.xlu0 %v2071
        %v2077 = vpop.xlane.xlu0 %2076
        %v2078 = vmul.f32 %v2075, %v1726
        %v2079 = vmul.f32 %v2077, %v1726
        %v2080 = vsub.f32 %v2070, %v2078
        %v2081 = vsub.f32 %v2071, %v2079
        %v2082 = vmul.f32 %v2080, %v2080
        %v2083 = vmul.f32 %v2081, %v2081
        %2084 = vadd.xlane.f32.xlu0 %v2082
        %v2085 = vpop.xlane.xlu0 %2084
        %2086 = vadd.xlane.f32.xlu0 %v2083
        %v2087 = vpop.xlane.xlu0 %2086
        %v2088 = vmul.f32 %v2085, %v1726
        %v2089 = vmul.f32 %v2087, %v1726
        %v2090 = vadd.f32 %v2088, 1e-05
        %v2091 = vadd.f32 %v2089, 1e-05
        %v2092 = vrsqrt.pop %v2090
        %v2093 = vmul.f32 %v2092, %v2090
        %v2094 = vmul.f32 %v2093, %v2092
        %v2095 = vmul.f32 0.5, %v2094
        %v2096 = vsub.f32 1.5, %v2095
        %v2097 = vmul.f32 %v2092, %v2096
        %vm2098 = vweird.f32 %v2090
        %vm2099 = vweird.f32 %v2092
        %vm2100 = vmor %vm2098, %vm2099
        %v2101 = vsel %vm2100, %v2092, %v2097
        %v2102 = vrsqrt.pop %v2091
        %v2103 = vmul.f32 %v2102, %v2091
        %v2104 = vmul.f32 %v2103, %v2102
        %v2105 = vmul.f32 0.5, %v2104
        %v2106 = vsub.f32 1.5, %v2105
        %v2107 = vmul.f32 %v2102, %v2106
        %vm2108 = vweird.f32 %v2091
        %vm2109 = vweird.f32 %v2102
        %vm2110 = vmor %vm2108, %vm2109
        %v2111 = vsel %vm2110, %v2102, %v2107
        %v2112 = vmul.f32 %v2080, %v2101
        %v2113 = vmul.f32 %v2081, %v2111
        %v2115 = vperm.slane %v2072, 0
        %v2117 = vmul.f32 %v2112, %v2115
        %v2118 = vmul.f32 %v2113, %v2115
        %v2120 = vperm.slane %v2073, 0
        %v2122 = vadd.f32 %v2117, %v2120
        %v2123 = vadd.f32 %v2118, %v2120
        %2124 = vst [vmem:[#allocation2] sm:$0xff] %v2122
        %2125 = vst [vmem:[#allocation2 + $0x8] sm:$0xff] %v2123
        %p2126 = scmp.eq.s32.totalorder %s35, 1
        // Predicated region
        $region129: #{tpu_custom_call.1} parent=83 // pred_check
          %p2127 = pneg %p2126
        $region130: #{tpu_custom_call.1} parent=83 // pred_check_branch
          %2129 = sbr.rel (%p2127) target = $region132
        $region131: #{tpu_custom_call.1} parent=83 // pred_region
          %v2130 = vpack.c.bf16 %v2123, %v2122
          %v2131 = vld [vmem:[#allocation16] sm:$0xf]
          %v2132 = vld [vmem:[#allocation16 + $0x4] sm:$0xf]
          %v2133 = vld [vmem:[#allocation16 + $0x8] sm:$0xf]
          %v2134 = vld [vmem:[#allocation16 + $0xc] sm:$0xf]
          %v2135 = vld [vmem:[#allocation16 + $0x10] sm:$0xf]
          %v2136 = vld [vmem:[#allocation16 + $0x14] sm:$0xf]
          %v2137 = vld [vmem:[#allocation16 + $0x18] sm:$0xf]
          %v2138 = vld [vmem:[#allocation16 + $0x1c] sm:$0xf]
          %v2139 = vld [vmem:[#allocation16 + $0x20] sm:$0xf]
          %v2140 = vld [vmem:[#allocation16 + $0x24] sm:$0xf]
          %v2141 = vld [vmem:[#allocation16 + $0x28] sm:$0xf]
          %v2142 = vld [vmem:[#allocation16 + $0x2c] sm:$0xf]
          %v2143 = vld [vmem:[#allocation16 + $0x30] sm:$0xf]
          %v2144 = vld [vmem:[#allocation16 + $0x34] sm:$0xf]
          %v2145 = vld [vmem:[#allocation16 + $0x38] sm:$0xf]
          %v2146 = vld [vmem:[#allocation16 + $0x3c] sm:$0xf]
          %v2147 = vld [vmem:[%s15] sm:$0x1]
          %v2149 = vperm.slane %v2147, 0
          %v2167 = vunpack.c.l.b16 %v2131
          %v2168 = vunpack.c.l.b16 %v2132
          %v2169 = vunpack.c.l.b16 %v2133
          %v2170 = vunpack.c.l.b16 %v2134
          %v2171 = vunpack.c.l.b16 %v2135
          %v2172 = vunpack.c.l.b16 %v2136
          %v2173 = vunpack.c.l.b16 %v2137
          %v2174 = vunpack.c.l.b16 %v2138
          %v2175 = vunpack.c.l.b16 %v2139
          %v2176 = vunpack.c.l.b16 %v2140
          %v2177 = vunpack.c.l.b16 %v2141
          %v2178 = vunpack.c.l.b16 %v2142
          %v2179 = vunpack.c.l.b16 %v2143
          %v2180 = vunpack.c.l.b16 %v2144
          %v2181 = vunpack.c.l.b16 %v2145
          %v2182 = vunpack.c.l.b16 %v2146
          %v2183 = vpack.c.b16 %v2168, %v2167
          %v2184 = vpack.c.b16 %v2170, %v2169
          %v2185 = vpack.c.b16 %v2172, %v2171
          %v2186 = vpack.c.b16 %v2174, %v2173
          %v2187 = vpack.c.b16 %v2176, %v2175
          %v2188 = vpack.c.b16 %v2178, %v2177
          %v2189 = vpack.c.b16 %v2180, %v2179
          %v2190 = vpack.c.b16 %v2182, %v2181
          %2199 = vmatpush.bf16.msra.mxu0 %v2190
          %2200 = vmatpush.bf16.msra.mxu0 %v2189
          %2201 = vmatpush.bf16.msra.mxu0 %v2188
          %2202 = vmatpush.bf16.msra.mxu0 %v2187
          %2203 = vmatpush.bf16.msra.mxu0 %v2186
          %2204 = vmatpush.bf16.msra.mxu0 %v2185
          %2205 = vmatpush.bf16.msra.mxu0 %v2184
          %2206 = vmatpush.bf16.msra.mxu0 %v2183
          %2207 = vmatmul.bf16.gmra.mxu0 %v2130
          %v2208 = vpop.f32.mrf.mxu0
          %v2209 = vadd.f32 %v2149, %v2208
          %v2210 = vpop.f32.mrf.mxu0
          %v2211 = vadd.f32 %v2149, %v2210
          %2212 = vdwg.mxu0
          %2213 = vst [vmem:[#allocation17] sm:$0xff] %v2209
          %2214 = vst [vmem:[#allocation17 + $0x8] sm:$0xff] %v2211
        $region132: #{tpu_custom_call.1} parent=83 // pred_fallthru
          _
        // Predicated region
        $region133: #{tpu_custom_call.1} parent=83 // pred_check
          %p2215 = pneg %p466
        $region134: #{tpu_custom_call.1} parent=83 // pred_check_branch
          %2217 = sbr.rel (%p2215) target = $region136
        $region135: #{tpu_custom_call.1} parent=83 // pred_region
          %s2218 = smul.u32 2, %s34
          %2220 = vsyncadd [#allocation6], 0
          %s2221 = smul.addr %s2218, 8
          %s2222 = scalar_lea.hbm %s16, %s2221
          %s2223 = sshll.u32 [#allocation17], 4
          %s2224 = int_to_ptr.vmem [resolvable:$true] %s2223
          %s2225 = sshll.u32 %s2222, 4
          %s2226 = int_to_ptr.hbm [resolvable:$true] %s2225
          %2231 = dma.vmem_to_hbm [thread:$0]  %s2224, 256, %s2226, [#allocation6], 128, 128, 8
        $region136: #{tpu_custom_call.1} parent=83 // pred_fallthru
          _
        // Predicated region
        $region137: #{tpu_custom_call.1} parent=83 // pred_check
          %p2232 = pneg %p466
        $region138: #{tpu_custom_call.1} parent=83 // pred_check_branch
          %2234 = sbr.rel (%p2232) target = $region140
        $region139: #{tpu_custom_call.1} parent=83 // pred_region
          %2236 = dma.done [#allocation6], 256
        $region140: #{tpu_custom_call.1} parent=83 // pred_fallthru
          _
      $region84: #{tpu_custom_call.1} parent=5 // pred_fallthru
        _
      %p2237 = scmp.le.s32.totalorder 2, %s25
      // Predicated region
      $region141: #{tpu_custom_call.1} parent=5 // pred_check
        %p2238 = pneg %p2237
      $region142: #{tpu_custom_call.1} parent=5 // pred_check_branch
        %2240 = sbr.rel (%p2238) target = $region144
      $region143: #{tpu_custom_call.1} parent=5 // pred_region
        %s2241 = ssub.s32 %s25, 2
      $region144: #{tpu_custom_call.1} parent=5 // pred_fallthru
        _
    $region6: #{tpu_custom_call.1} parent=1 // loop_footer
      %s29 = sadd.s32 1, %s25
    $region7: #{tpu_custom_call.1} parent=1 // loop_footer_branch
      %24 = sbr.rel target = $region3
    $region8: #{tpu_custom_call.1} parent=1 // loop_exit
      _
    %2242 = vsyncpa [#allocation5], 1
    %s2243 = scalar_lea.sflag [#allocation5], 1
    %2244 = vsyncpa %s2243, 1
    %2245 = vsyncpa [#allocation8], 1
    %2246 = vsyncpa [#allocation6], 1
    %s2247 = scalar_lea.sflag [#allocation6], 1
    %2248 = vsyncpa %s2247, 1

</llo_original>
